<compile_context>
chip_gen: v7x
topology: tpu7x:2x2x1
jax: 0.10.0
libtpu: 0.0.40
codegen_flags: <defaults>
</compile_context>

<pallas_src>
import functools
import math

import jax
import jax.numpy as jnp
from jax import lax
from jax.experimental import pallas as pl
from jax.experimental.pallas import tpu as pltpu


# ----------------------------------------------------------------------------
# Fused MHA kernel: one batch element per grid step.
# ----------------------------------------------------------------------------
def _mha_kernel(xq_ref, xk_ref, xv_ref,
                wq_ref, bq_ref, wk_ref, bk_ref, wv_ref, bv_ref,
                wp_ref, bp_ref, *rest,
                head_count, abstract_dim, scale, mask_coef, mask_mode):
    if mask_mode == "explicit":
        mask_ref, o_ref, q_s, k_s, v_s = rest
    else:
        o_ref, q_s, k_s, v_s = rest

    T = xq_ref.shape[1]
    H, Da = head_count, abstract_dim

    # ---- Q/K/V projections: lane-dense (T, H*Da) results kept in VMEM scratch.
    #      The 1/sqrt(Da) scale is folded into Q here (cheaper than scaling each (T,T)
    #      score block per head).
    def project(x_ref, w_ref, b_ref, s_ref, mul=None):
        y = jnp.dot(x_ref[0], w_ref[...], preferred_element_type=jnp.float32)
        y = y + b_ref[...]
        if mul is not None:
            y = y * mul
        s_ref[...] = y.astype(s_ref.dtype)

    project(xq_ref, wq_ref, bq_ref, q_s, mul=jnp.float32(scale))
    project(xk_ref, wk_ref, bk_ref, k_s)
    project(xv_ref, wv_ref, bv_ref, v_s)

    # ---- Mask predicate, computed once and shared by every head.
    if mask_mode == "causal":
        row = lax.broadcasted_iota(jnp.int32, (T, T), 0)
        col = lax.broadcasted_iota(jnp.int32, (T, T), 1)
        masked_out = row < col                      # True -> fill with mask_coef
    elif mask_mode == "explicit":
        masked_out = mask_ref[0].astype(jnp.int32) == 0
    else:
        masked_out = None

    # ---- Per-head attention; heads are static lane slices of the scratch.
    #      Each head's context overwrites its Q slice (Q rows are dead after the scores
    #      matmul), so the output projection below is one big matmul.
    for h in range(H):                               # static unroll (H is small)
        lo, hi = h * Da, (h + 1) * Da
        q_h = q_s[:, lo:hi]                          # (T, Da), already scaled
        k_h = k_s[:, lo:hi]
        v_h = v_s[:, lo:hi]

        # QK^T: contract the last dims of both operands (no transpose materialized).
        s = lax.dot_general(q_h, k_h, (((1,), (1,)), ((), ())),
                            preferred_element_type=jnp.float32)          # (T, T) f32
        if masked_out is not None:
            s = jnp.where(masked_out, jnp.float32(mask_coef), s)

        # Numerically stable softmax, f32 on VPU/EUP; divide moved to EUP reciprocal.
        s = s - jnp.max(s, axis=-1, keepdims=True)
        p = jnp.exp(s)
        p = p * pl.reciprocal(jnp.sum(p, axis=-1, keepdims=True), approx=True)
        # TODO(synk): nn.Dropout on attention weights is inference-mode identity here.

        ctx = jnp.dot(p.astype(v_h.dtype), v_h,
                      preferred_element_type=jnp.float32)                # (T, Da)
        q_s[:, lo:hi] = ctx.astype(q_s.dtype)        # reuse Q scratch as context buffer

    # ---- Output projection: single (T, H*Da) @ (H*Da, dim) MXU matmul + bias.
    out = jnp.dot(q_s[...], wp_ref[...], preferred_element_type=jnp.float32)
    o_ref[0] = (out + bp_ref[...]).astype(o_ref.dtype)


# ----------------------------------------------------------------------------
# Wrapper: one pallas_call for the whole block.
# ----------------------------------------------------------------------------
def multi_head_attention_block(q, k, v, mask, params, *, context_length, dim,
                               head_count, abstract_dim, causal_mask=False,
                               matmul_dtype=jnp.float32):
    """Forward pass of MultiHeadAttentionBlock.

    q, k, v : (B, context_length, dim) float32
    mask    : None, (T, T) or (B, 1, T, T); entries equal to 0 are masked out.
    causal_mask=True generates a causal mask in-kernel (ignores `mask`, no mask HBM traffic).
    matmul_dtype: jnp.float32 (exact) or jnp.bfloat16 (bf16 MXU path for v5e/v6e;
                  softmax and accumulation stay in f32).
    """
    B = q.shape[0]
    T, H, Da = context_length, head_count, abstract_dim
    inner = H * Da
    scale = 1.0 / math.sqrt(abstract_dim)            # host-side constant
    mask_coef = -1000000000000.0

    if causal_mask:
        mask_mode = "causal"
    elif mask is not None:
        mask_mode = "explicit"
    else:
        mask_mode = "none"

    cast = lambda a: a.astype(matmul_dtype)
    # Matmul operands may be down-cast; biases stay f32 (added to f32 accumulators).
    xq, xk, xv = cast(q), cast(k), cast(v)
    wq, wk, wv, wp = (cast(params[n]) for n in ("wq", "wk", "wv", "wp"))
    bq = params["bq"].reshape(1, inner).astype(jnp.float32)
    bk = params["bk"].reshape(1, inner).astype(jnp.float32)
    bv = params["bv"].reshape(1, inner).astype(jnp.float32)
    bp = params["bp"].reshape(1, dim).astype(jnp.float32)

    act_spec = pl.BlockSpec((1, T, dim), lambda b: (b, 0, 0))
    out_spec = pl.BlockSpec((1, T, dim), lambda b: (b, 0, 0))
    wqkv_spec = pl.BlockSpec((dim, inner), lambda b: (0, 0))   # constant block -> stays resident
    bqkv_spec = pl.BlockSpec((1, inner), lambda b: (0, 0))
    wp_spec = pl.BlockSpec((inner, dim), lambda b: (0, 0))
    bp_spec = pl.BlockSpec((1, dim), lambda b: (0, 0))

    inputs = [xq, xk, xv, wq, bq, wk, bk, wv, bv, wp, bp]
    in_specs = [act_spec, act_spec, act_spec,
                wqkv_spec, bqkv_spec, wqkv_spec, bqkv_spec, wqkv_spec, bqkv_spec,
                wp_spec, bp_spec]
    if mask_mode == "explicit":
        m = jnp.broadcast_to(mask, (B, 1, T, T)).reshape(B, T, T)
        inputs.append((m != 0).astype(jnp.int8))     # compact int8 mask, not f32
        in_specs.append(pl.BlockSpec((1, T, T), lambda b: (b, 0, 0)))

    kern = functools.partial(_mha_kernel, head_count=H, abstract_dim=Da,
                             scale=scale, mask_coef=mask_coef, mask_mode=mask_mode)

    # TODO(synk): for realistic context lengths add a KV grid axis with a flash-style
    # online-softmax accumulator so the (T, T) score block never fully materializes
    # (required to stay within v7x's 64 MiB VMEM).
    return pl.pallas_call(
        kern,
        out_shape=jax.ShapeDtypeStruct((B, T, dim), jnp.float32),
        grid=(B,),
        in_specs=in_specs,
        out_specs=out_spec,
        scratch_shapes=[pltpu.VMEM((T, inner), matmul_dtype)] * 3,
        compiler_params=pltpu.CompilerParams(dimension_semantics=("parallel",)),
    )(*inputs)


# ----------------------------------------------------------------------------
# Pure-JAX reference (mirrors the PyTorch forward) for correctness checks.
# ----------------------------------------------------------------------------
def reference_forward(q, k, v, mask, params, *, context_length, dim,
                      head_count, abstract_dim):
    B, T, H, Da = q.shape[0], context_length, head_count, abstract_dim
    qv = q @ params["wq"] + params["bq"]
    kv = k @ params["wk"] + params["bk"]
    vv = v @ params["wv"] + params["bv"]
    sh = lambda x: jnp.transpose(x.reshape(B, T, H, Da), (0, 2, 1, 3))
    qv, kv, vv = sh(qv), sh(kv), sh(vv)
    scores = jnp.einsum("bhqd,bhkd->bhqk", qv, kv) / jnp.sqrt(jnp.float32(Da))
    if mask is not None:
        scores = jnp.where(mask == 0, jnp.float32(-1000000000000.0), scores)
    w = jax.nn.softmax(scores, axis=-1)
    out = jnp.einsum("bhqk,bhkd->bhqd", w, vv)
    out = jnp.transpose(out, (0, 2, 1, 3)).reshape(B, T, H * Da)
    return out @ params["wp"] + params["bp"]


if __name__ == "__main__":
    # Module hyper-parameters (small, MHA-consistent shapes).
    batch = 2
    context_length = 8
    dim = 32
    head_count = 4
    abstraction_coef = 0.5
    abstract_dim = int(dim * abstraction_coef)       # 16
    inner = head_count * abstract_dim                # 64

    key = jax.random.PRNGKey(0)
    keys = jax.random.split(key, 12)

    # Deterministic parameter init (nn.Linear shapes; stored as (in, out) for x @ W).
    def init_linear(kw, kb, fan_in, fan_out):
        bound = 1.0 / (fan_in ** 0.5)
        w = jax.random.uniform(kw, (fan_in, fan_out), jnp.float32, -bound, bound)
        b = jax.random.uniform(kb, (fan_out,), jnp.float32, -bound, bound)
        return w, b

    wq, bq = init_linear(keys[0], keys[1], dim, inner)
    wk, bk = init_linear(keys[2], keys[3], dim, inner)
    wv, bv = init_linear(keys[4], keys[5], dim, inner)
    wp, bp = init_linear(keys[6], keys[7], inner, dim)
    params = dict(wq=wq, bq=bq, wk=wk, bk=bk, wv=wv, bv=bv, wp=wp, bp=bp)

    q = jax.random.normal(keys[8], (batch, context_length, dim), jnp.float32)
    k = jax.random.normal(keys[9], (batch, context_length, dim), jnp.float32)
    v = jax.random.normal(keys[10], (batch, context_length, dim), jnp.float32)
    causal = jnp.tril(jnp.ones((context_length, context_length), jnp.float32))
    mask = jnp.broadcast_to(causal, (batch, 1, context_length, context_length))

    hp = dict(context_length=context_length, dim=dim,
              head_count=head_count, abstract_dim=abstract_dim)

    ref_causal = reference_forward(q, k, v, mask, params, **hp)
    ref_nomask = reference_forward(q, k, v, None, params, **hp)

    # 1) Causal mask generated in-kernel (zero mask HBM traffic).
    out = jax.block_until_ready(
        multi_head_attention_block(q, k, v, None, params, causal_mask=True, **hp))
    assert out.shape == (batch, context_length, dim)
    assert jnp.allclose(out, ref_causal, atol=1e-3, rtol=1e-3), "causal-mask mismatch"

    # 2) Arbitrary mask passed explicitly (int8 path), matching the module's API.
    out = jax.block_until_ready(
        multi_head_attention_block(q, k, v, mask, params, **hp))
    assert jnp.allclose(out, ref_causal, atol=1e-3, rtol=1e-3), "explicit-mask mismatch"

    # 3) mask=None (no masking), as in the PyTorch module.
    out = jax.block_until_ready(
        multi_head_attention_block(q, k, v, None, params, **hp))
    assert jnp.allclose(out, ref_nomask, atol=1e-3, rtol=1e-3), "no-mask mismatch"

    # 4) bf16 MXU path (v5e/v6e recommendation): f32 accumulation + f32 softmax.
    out = jax.block_until_ready(
        multi_head_attention_block(q, k, v, None, params, causal_mask=True,
                                   matmul_dtype=jnp.bfloat16, **hp))
    assert jnp.allclose(out, ref_causal, atol=5e-2, rtol=5e-2), "bf16 path mismatch"

    print("KERNEL_OK")
</pallas_src>

<mosaic_0001>
module attributes {stable_mosaic.version = 11 : i64} {
  func.func @_mha_kernel(%arg0: i32, %arg1: memref<1x8x32xf32, #tpu.memory_space<vmem>>, %arg2: memref<1x8x32xf32, #tpu.memory_space<vmem>>, %arg3: memref<1x8x32xf32, #tpu.memory_space<vmem>>, %arg4: memref<32x64xf32, #tpu.memory_space<vmem>>, %arg5: memref<1x64xf32, #tpu.memory_space<vmem>>, %arg6: memref<32x64xf32, #tpu.memory_space<vmem>>, %arg7: memref<1x64xf32, #tpu.memory_space<vmem>>, %arg8: memref<32x64xf32, #tpu.memory_space<vmem>>, %arg9: memref<1x64xf32, #tpu.memory_space<vmem>>, %arg10: memref<64x32xf32, #tpu.memory_space<vmem>>, %arg11: memref<1x32xf32, #tpu.memory_space<vmem>>, %arg12: memref<1x8x32xf32, #tpu.memory_space<vmem>>, %arg13: memref<8x64xf32, #tpu.memory_space<vmem>>, %arg14: memref<8x64xf32, #tpu.memory_space<vmem>>, %arg15: memref<8x64xf32, #tpu.memory_space<vmem>>) attributes {dimension_semantics = [#tpu.dimension_semantics<parallel>], iteration_bounds = array<i64: 2>, scalar_prefetch = 0 : i64, scratch_operands = 3 : i64, tpu.core_type = #tpu.core_type<tc>, window_params = [{transform_indices = @transform_0, window_bounds = array<i64: 1, 8, 32>}, {transform_indices = @transform_1, window_bounds = array<i64: 1, 8, 32>}, {transform_indices = @transform_2, window_bounds = array<i64: 1, 8, 32>}, {pipeline_mode = #tpu.pipeline_mode<synchronous>, transform_indices = @transform_3, window_bounds = array<i64: 32, 64>}, {pipeline_mode = #tpu.pipeline_mode<synchronous>, transform_indices = @transform_4, window_bounds = array<i64: 1, 64>}, {pipeline_mode = #tpu.pipeline_mode<synchronous>, transform_indices = @transform_5, window_bounds = array<i64: 32, 64>}, {pipeline_mode = #tpu.pipeline_mode<synchronous>, transform_indices = @transform_6, window_bounds = array<i64: 1, 64>}, {pipeline_mode = #tpu.pipeline_mode<synchronous>, transform_indices = @transform_7, window_bounds = array<i64: 32, 64>}, {pipeline_mode = #tpu.pipeline_mode<synchronous>, transform_indices = @transform_8, window_bounds = array<i64: 1, 64>}, {pipeline_mode = #tpu.pipeline_mode<synchronous>, transform_indices = @transform_9, window_bounds = array<i64: 64, 32>}, {pipeline_mode = #tpu.pipeline_mode<synchronous>, transform_indices = @transform_10, window_bounds = array<i64: 1, 32>}, {transform_indices = @transform_11, window_bounds = array<i64: 1, 8, 32>}]} {
    %c0 = arith.constant 0 : index
    %c0_0 = arith.constant 0 : index
    %c0_1 = arith.constant 0 : index
    %0 = vector.load %arg1[%c0, %c0_0, %c0_1] : memref<1x8x32xf32, #tpu.memory_space<vmem>>, vector<1x8x32xf32>
    %1 = vector.shape_cast %0 : vector<1x8x32xf32> to vector<8x32xf32>
    %c0_2 = arith.constant 0 : index
    %c0_3 = arith.constant 0 : index
    %2 = vector.load %arg4[%c0_2, %c0_3] : memref<32x64xf32, #tpu.memory_space<vmem>>, vector<32x64xf32>
    %cst = arith.constant dense<0.000000e+00> : vector<8x64xf32>
    %3 = tpu.matmul %1, %2, %cst {dimension_numbers = #tpu.dot_dimension_numbers<[1], [0], [0], [1], [0, 0, 1, 1], [], []>} : vector<8x32xf32>, vector<32x64xf32>, vector<8x64xf32> -> vector<8x64xf32>
    %c0_4 = arith.constant 0 : index
    %c0_5 = arith.constant 0 : index
    %4 = vector.load %arg5[%c0_4, %c0_5] : memref<1x64xf32, #tpu.memory_space<vmem>>, vector<1x64xf32>
    %5 = vector.broadcast %4 : vector<1x64xf32> to vector<8x64xf32>
    %6 = arith.addf %3, %5 : vector<8x64xf32>
    %cst_6 = arith.constant 2.500000e-01 : f32
    %7 = vector.broadcast %cst_6 : f32 to vector<8x64xf32>
    %8 = arith.mulf %6, %7 : vector<8x64xf32>
    %c0_7 = arith.constant 0 : index
    %c0_8 = arith.constant 0 : index
    %9 = vector.load %arg13[%c0_7, %c0_8] : memref<8x64xf32, #tpu.memory_space<vmem>>, vector<8x64xf32>
    tpu.vector_store %arg13[%c0_7, %c0_8], %8 {strides = array<i32>} : memref<8x64xf32, #tpu.memory_space<vmem>>, vector<8x64xf32>,
    %c0_9 = arith.constant 0 : index
    %c0_10 = arith.constant 0 : index
    %c0_11 = arith.constant 0 : index
    %10 = vector.load %arg2[%c0_9, %c0_10, %c0_11] : memref<1x8x32xf32, #tpu.memory_space<vmem>>, vector<1x8x32xf32>
    %11 = vector.shape_cast %10 : vector<1x8x32xf32> to vector<8x32xf32>
    %c0_12 = arith.constant 0 : index
    %c0_13 = arith.constant 0 : index
    %12 = vector.load %arg6[%c0_12, %c0_13] : memref<32x64xf32, #tpu.memory_space<vmem>>, vector<32x64xf32>
    %cst_14 = arith.constant dense<0.000000e+00> : vector<8x64xf32>
    %13 = tpu.matmul %11, %12, %cst_14 {dimension_numbers = #tpu.dot_dimension_numbers<[1], [0], [0], [1], [0, 0, 1, 1], [], []>} : vector<8x32xf32>, vector<32x64xf32>, vector<8x64xf32> -> vector<8x64xf32>
    %c0_15 = arith.constant 0 : index
    %c0_16 = arith.constant 0 : index
    %14 = vector.load %arg7[%c0_15, %c0_16] : memref<1x64xf32, #tpu.memory_space<vmem>>, vector<1x64xf32>
    %15 = vector.broadcast %14 : vector<1x64xf32> to vector<8x64xf32>
    %16 = arith.addf %13, %15 : vector<8x64xf32>
    %c0_17 = arith.constant 0 : index
    %c0_18 = arith.constant 0 : index
    %17 = vector.load %arg14[%c0_17, %c0_18] : memref<8x64xf32, #tpu.memory_space<vmem>>, vector<8x64xf32>
    tpu.vector_store %arg14[%c0_17, %c0_18], %16 {strides = array<i32>} : memref<8x64xf32, #tpu.memory_space<vmem>>, vector<8x64xf32>,
    %c0_19 = arith.constant 0 : index
    %c0_20 = arith.constant 0 : index
    %c0_21 = arith.constant 0 : index
    %18 = vector.load %arg3[%c0_19, %c0_20, %c0_21] : memref<1x8x32xf32, #tpu.memory_space<vmem>>, vector<1x8x32xf32>
    %19 = vector.shape_cast %18 : vector<1x8x32xf32> to vector<8x32xf32>
    %c0_22 = arith.constant 0 : index
    %c0_23 = arith.constant 0 : index
    %20 = vector.load %arg8[%c0_22, %c0_23] : memref<32x64xf32, #tpu.memory_space<vmem>>, vector<32x64xf32>
    %cst_24 = arith.constant dense<0.000000e+00> : vector<8x64xf32>
    %21 = tpu.matmul %19, %20, %cst_24 {dimension_numbers = #tpu.dot_dimension_numbers<[1], [0], [0], [1], [0, 0, 1, 1], [], []>} : vector<8x32xf32>, vector<32x64xf32>, vector<8x64xf32> -> vector<8x64xf32>
    %c0_25 = arith.constant 0 : index
    %c0_26 = arith.constant 0 : index
    %22 = vector.load %arg9[%c0_25, %c0_26] : memref<1x64xf32, #tpu.memory_space<vmem>>, vector<1x64xf32>
    %23 = vector.broadcast %22 : vector<1x64xf32> to vector<8x64xf32>
    %24 = arith.addf %21, %23 : vector<8x64xf32>
    %c0_27 = arith.constant 0 : index
    %c0_28 = arith.constant 0 : index
    %25 = vector.load %arg15[%c0_27, %c0_28] : memref<8x64xf32, #tpu.memory_space<vmem>>, vector<8x64xf32>
    tpu.vector_store %arg15[%c0_27, %c0_28], %24 {strides = array<i32>} : memref<8x64xf32, #tpu.memory_space<vmem>>, vector<8x64xf32>,
    %26 = tpu.iota {dimensions = array<i32: 0>} : vector<8x8xi32>
    %27 = tpu.iota {dimensions = array<i32: 1>} : vector<8x8xi32>
    %28 = arith.cmpi slt, %26, %27 : vector<8x8xi32>
    %c0_29 = arith.constant 0 : index
    %c0_30 = arith.constant 0 : index
    %29 = vector.load %arg13[%c0_29, %c0_30] : memref<8x64xf32, #tpu.memory_space<vmem>>, vector<8x16xf32>
    %c0_31 = arith.constant 0 : index
    %c0_32 = arith.constant 0 : index
    %30 = vector.load %arg14[%c0_31, %c0_32] : memref<8x64xf32, #tpu.memory_space<vmem>>, vector<8x16xf32>
    %c0_33 = arith.constant 0 : index
    %c0_34 = arith.constant 0 : index
    %31 = vector.load %arg15[%c0_33, %c0_34] : memref<8x64xf32, #tpu.memory_space<vmem>>, vector<8x16xf32>
    %cst_35 = arith.constant dense<0.000000e+00> : vector<8x8xf32>
    %32 = tpu.matmul %29, %30, %cst_35 {dimension_numbers = #tpu.dot_dimension_numbers<[1], [1], [0], [0], [0, 0, 1, 0], [], []>} : vector<8x16xf32>, vector<8x16xf32>, vector<8x8xf32> -> vector<8x8xf32>
    %cst_36 = arith.constant -9.99999995E+11 : f32
    %33 = vector.broadcast %cst_36 : f32 to vector<8x8xf32>
    %34 = arith.select %28, %33, %32 : vector<8x8xi1>, vector<8x8xf32>
    %cst_37 = arith.constant dense<0xFF800000> : vector<8xf32>
    %35 = vector.multi_reduction <maximumf>, %34, %cst_37 [1] : vector<8x8xf32> to vector<8xf32>
    %36 = vector.shape_cast %35 : vector<8xf32> to vector<8x1xf32>
    %37 = vector.broadcast %36 : vector<8x1xf32> to vector<8x8xf32>
    %38 = arith.subf %34, %37 : vector<8x8xf32>
    %39 = math.exp %38 : vector<8x8xf32>
    %cst_38 = arith.constant dense<0.000000e+00> : vector<8xf32>
    %40 = vector.multi_reduction <add>, %39, %cst_38 [1] : vector<8x8xf32> to vector<8xf32>
    %41 = vector.shape_cast %40 : vector<8xf32> to vector<8x1xf32>
    %42 = tpu.reciprocal %41 {approx = true} : vector<8x1xf32> -> vector<8x1xf32>
    %43 = vector.broadcast %42 : vector<8x1xf32> to vector<8x8xf32>
    %44 = arith.mulf %39, %43 : vector<8x8xf32>
    %cst_39 = arith.constant dense<0.000000e+00> : vector<8x16xf32>
    %45 = tpu.matmul %44, %31, %cst_39 {dimension_numbers = #tpu.dot_dimension_numbers<[1], [0], [0], [1], [0, 0, 1, 1], [], []>} : vector<8x8xf32>, vector<8x16xf32>, vector<8x16xf32> -> vector<8x16xf32>
    %c0_40 = arith.constant 0 : index
    %c0_41 = arith.constant 0 : index
    %46 = vector.load %arg13[%c0_40, %c0_41] : memref<8x64xf32, #tpu.memory_space<vmem>>, vector<8x16xf32>
    tpu.vector_store %arg13[%c0_40, %c0_41], %45 {strides = array<i32>} : memref<8x64xf32, #tpu.memory_space<vmem>>, vector<8x16xf32>,
    %c0_42 = arith.constant 0 : index
    %c16 = arith.constant 16 : index
    %47 = vector.load %arg13[%c0_42, %c16] : memref<8x64xf32, #tpu.memory_space<vmem>>, vector<8x16xf32>
    %c0_43 = arith.constant 0 : index
    %c16_44 = arith.constant 16 : index
    %48 = vector.load %arg14[%c0_43, %c16_44] : memref<8x64xf32, #tpu.memory_space<vmem>>, vector<8x16xf32>
    %c0_45 = arith.constant 0 : index
    %c16_46 = arith.constant 16 : index
    %49 = vector.load %arg15[%c0_45, %c16_46] : memref<8x64xf32, #tpu.memory_space<vmem>>, vector<8x16xf32>
    %cst_47 = arith.constant dense<0.000000e+00> : vector<8x8xf32>
    %50 = tpu.matmul %47, %48, %cst_47 {dimension_numbers = #tpu.dot_dimension_numbers<[1], [1], [0], [0], [0, 0, 1, 0], [], []>} : vector<8x16xf32>, vector<8x16xf32>, vector<8x8xf32> -> vector<8x8xf32>
    %cst_48 = arith.constant -9.99999995E+11 : f32
    %51 = vector.broadcast %cst_48 : f32 to vector<8x8xf32>
    %52 = arith.select %28, %51, %50 : vector<8x8xi1>, vector<8x8xf32>
    %cst_49 = arith.constant dense<0xFF800000> : vector<8xf32>
    %53 = vector.multi_reduction <maximumf>, %52, %cst_49 [1] : vector<8x8xf32> to vector<8xf32>
    %54 = vector.shape_cast %53 : vector<8xf32> to vector<8x1xf32>
    %55 = vector.broadcast %54 : vector<8x1xf32> to vector<8x8xf32>
    %56 = arith.subf %52, %55 : vector<8x8xf32>
    %57 = math.exp %56 : vector<8x8xf32>
    %cst_50 = arith.constant dense<0.000000e+00> : vector<8xf32>
    %58 = vector.multi_reduction <add>, %57, %cst_50 [1] : vector<8x8xf32> to vector<8xf32>
    %59 = vector.shape_cast %58 : vector<8xf32> to vector<8x1xf32>
    %60 = tpu.reciprocal %59 {approx = true} : vector<8x1xf32> -> vector<8x1xf32>
    %61 = vector.broadcast %60 : vector<8x1xf32> to vector<8x8xf32>
    %62 = arith.mulf %57, %61 : vector<8x8xf32>
    %cst_51 = arith.constant dense<0.000000e+00> : vector<8x16xf32>
    %63 = tpu.matmul %62, %49, %cst_51 {dimension_numbers = #tpu.dot_dimension_numbers<[1], [0], [0], [1], [0, 0, 1, 1], [], []>} : vector<8x8xf32>, vector<8x16xf32>, vector<8x16xf32> -> vector<8x16xf32>
    %c0_52 = arith.constant 0 : index
    %c16_53 = arith.constant 16 : index
    %64 = vector.load %arg13[%c0_52, %c16_53] : memref<8x64xf32, #tpu.memory_space<vmem>>, vector<8x16xf32>
    tpu.vector_store %arg13[%c0_52, %c16_53], %63 {strides = array<i32>} : memref<8x64xf32, #tpu.memory_space<vmem>>, vector<8x16xf32>,
    %c0_54 = arith.constant 0 : index
    %c32 = arith.constant 32 : index
    %65 = vector.load %arg13[%c0_54, %c32] : memref<8x64xf32, #tpu.memory_space<vmem>>, vector<8x16xf32>
    %c0_55 = arith.constant 0 : index
    %c32_56 = arith.constant 32 : index
    %66 = vector.load %arg14[%c0_55, %c32_56] : memref<8x64xf32, #tpu.memory_space<vmem>>, vector<8x16xf32>
    %c0_57 = arith.constant 0 : index
    %c32_58 = arith.constant 32 : index
    %67 = vector.load %arg15[%c0_57, %c32_58] : memref<8x64xf32, #tpu.memory_space<vmem>>, vector<8x16xf32>
    %cst_59 = arith.constant dense<0.000000e+00> : vector<8x8xf32>
    %68 = tpu.matmul %65, %66, %cst_59 {dimension_numbers = #tpu.dot_dimension_numbers<[1], [1], [0], [0], [0, 0, 1, 0], [], []>} : vector<8x16xf32>, vector<8x16xf32>, vector<8x8xf32> -> vector<8x8xf32>
    %cst_60 = arith.constant -9.99999995E+11 : f32
    %69 = vector.broadcast %cst_60 : f32 to vector<8x8xf32>
    %70 = arith.select %28, %69, %68 : vector<8x8xi1>, vector<8x8xf32>
    %cst_61 = arith.constant dense<0xFF800000> : vector<8xf32>
    %71 = vector.multi_reduction <maximumf>, %70, %cst_61 [1] : vector<8x8xf32> to vector<8xf32>
    %72 = vector.shape_cast %71 : vector<8xf32> to vector<8x1xf32>
    %73 = vector.broadcast %72 : vector<8x1xf32> to vector<8x8xf32>
    %74 = arith.subf %70, %73 : vector<8x8xf32>
    %75 = math.exp %74 : vector<8x8xf32>
    %cst_62 = arith.constant dense<0.000000e+00> : vector<8xf32>
    %76 = vector.multi_reduction <add>, %75, %cst_62 [1] : vector<8x8xf32> to vector<8xf32>
    %77 = vector.shape_cast %76 : vector<8xf32> to vector<8x1xf32>
    %78 = tpu.reciprocal %77 {approx = true} : vector<8x1xf32> -> vector<8x1xf32>
    %79 = vector.broadcast %78 : vector<8x1xf32> to vector<8x8xf32>
    %80 = arith.mulf %75, %79 : vector<8x8xf32>
    %cst_63 = arith.constant dense<0.000000e+00> : vector<8x16xf32>
    %81 = tpu.matmul %80, %67, %cst_63 {dimension_numbers = #tpu.dot_dimension_numbers<[1], [0], [0], [1], [0, 0, 1, 1], [], []>} : vector<8x8xf32>, vector<8x16xf32>, vector<8x16xf32> -> vector<8x16xf32>
    %c0_64 = arith.constant 0 : index
    %c32_65 = arith.constant 32 : index
    %82 = vector.load %arg13[%c0_64, %c32_65] : memref<8x64xf32, #tpu.memory_space<vmem>>, vector<8x16xf32>
    tpu.vector_store %arg13[%c0_64, %c32_65], %81 {strides = array<i32>} : memref<8x64xf32, #tpu.memory_space<vmem>>, vector<8x16xf32>,
    %c0_66 = arith.constant 0 : index
    %c48 = arith.constant 48 : index
    %83 = vector.load %arg13[%c0_66, %c48] : memref<8x64xf32, #tpu.memory_space<vmem>>, vector<8x16xf32>
    %c0_67 = arith.constant 0 : index
    %c48_68 = arith.constant 48 : index
    %84 = vector.load %arg14[%c0_67, %c48_68] : memref<8x64xf32, #tpu.memory_space<vmem>>, vector<8x16xf32>
    %c0_69 = arith.constant 0 : index
    %c48_70 = arith.constant 48 : index
    %85 = vector.load %arg15[%c0_69, %c48_70] : memref<8x64xf32, #tpu.memory_space<vmem>>, vector<8x16xf32>
    %cst_71 = arith.constant dense<0.000000e+00> : vector<8x8xf32>
    %86 = tpu.matmul %83, %84, %cst_71 {dimension_numbers = #tpu.dot_dimension_numbers<[1], [1], [0], [0], [0, 0, 1, 0], [], []>} : vector<8x16xf32>, vector<8x16xf32>, vector<8x8xf32> -> vector<8x8xf32>
    %cst_72 = arith.constant -9.99999995E+11 : f32
    %87 = vector.broadcast %cst_72 : f32 to vector<8x8xf32>
    %88 = arith.select %28, %87, %86 : vector<8x8xi1>, vector<8x8xf32>
    %cst_73 = arith.constant dense<0xFF800000> : vector<8xf32>
    %89 = vector.multi_reduction <maximumf>, %88, %cst_73 [1] : vector<8x8xf32> to vector<8xf32>
    %90 = vector.shape_cast %89 : vector<8xf32> to vector<8x1xf32>
    %91 = vector.broadcast %90 : vector<8x1xf32> to vector<8x8xf32>
    %92 = arith.subf %88, %91 : vector<8x8xf32>
    %93 = math.exp %92 : vector<8x8xf32>
    %cst_74 = arith.constant dense<0.000000e+00> : vector<8xf32>
    %94 = vector.multi_reduction <add>, %93, %cst_74 [1] : vector<8x8xf32> to vector<8xf32>
    %95 = vector.shape_cast %94 : vector<8xf32> to vector<8x1xf32>
    %96 = tpu.reciprocal %95 {approx = true} : vector<8x1xf32> -> vector<8x1xf32>
    %97 = vector.broadcast %96 : vector<8x1xf32> to vector<8x8xf32>
    %98 = arith.mulf %93, %97 : vector<8x8xf32>
    %cst_75 = arith.constant dense<0.000000e+00> : vector<8x16xf32>
    %99 = tpu.matmul %98, %85, %cst_75 {dimension_numbers = #tpu.dot_dimension_numbers<[1], [0], [0], [1], [0, 0, 1, 1], [], []>} : vector<8x8xf32>, vector<8x16xf32>, vector<8x16xf32> -> vector<8x16xf32>
    %c0_76 = arith.constant 0 : index
    %c48_77 = arith.constant 48 : index
    %100 = vector.load %arg13[%c0_76, %c48_77] : memref<8x64xf32, #tpu.memory_space<vmem>>, vector<8x16xf32>
    tpu.vector_store %arg13[%c0_76, %c48_77], %99 {strides = array<i32>} : memref<8x64xf32, #tpu.memory_space<vmem>>, vector<8x16xf32>,
    %c0_78 = arith.constant 0 : index
    %c0_79 = arith.constant 0 : index
    %101 = vector.load %arg13[%c0_78, %c0_79] : memref<8x64xf32, #tpu.memory_space<vmem>>, vector<8x64xf32>
    %c0_80 = arith.constant 0 : index
    %c0_81 = arith.constant 0 : index
    %102 = vector.load %arg10[%c0_80, %c0_81] : memref<64x32xf32, #tpu.memory_space<vmem>>, vector<64x32xf32>
    %cst_82 = arith.constant dense<0.000000e+00> : vector<8x32xf32>
    %103 = tpu.matmul %101, %102, %cst_82 {dimension_numbers = #tpu.dot_dimension_numbers<[1], [0], [0], [1], [0, 0, 1, 1], [], []>} : vector<8x64xf32>, vector<64x32xf32>, vector<8x32xf32> -> vector<8x32xf32>
    %c0_83 = arith.constant 0 : index
    %c0_84 = arith.constant 0 : index
    %104 = vector.load %arg11[%c0_83, %c0_84] : memref<1x32xf32, #tpu.memory_space<vmem>>, vector<1x32xf32>
    %105 = vector.broadcast %104 : vector<1x32xf32> to vector<8x32xf32>
    %106 = arith.addf %103, %105 : vector<8x32xf32>
    %c0_85 = arith.constant 0 : index
    %c0_86 = arith.constant 0 : index
    %c0_87 = arith.constant 0 : index
    %107 = vector.load %arg12[%c0_85, %c0_86, %c0_87] : memref<1x8x32xf32, #tpu.memory_space<vmem>>, vector<1x8x32xf32>
    %108 = vector.shape_cast %107 : vector<1x8x32xf32> to vector<8x32xf32>
    %109 = vector.shape_cast %106 : vector<8x32xf32> to vector<1x8x32xf32>
    tpu.vector_store %arg12[%c0_85, %c0_86, %c0_87], %109 {strides = array<i32>} : memref<1x8x32xf32, #tpu.memory_space<vmem>>, vector<1x8x32xf32>,
    return
  }
  func.func @transform_0(%arg0: i32) -> (i32, i32, i32) {
    %c0_i32 = arith.constant 0 : i32
    %c0_i32_0 = arith.constant 0 : i32
    %c0_i32_1 = arith.constant 0 : i32
    return %arg0, %c0_i32, %c0_i32_0 : i32, i32, i32
  }
  func.func @transform_1(%arg0: i32) -> (i32, i32, i32) {
    %c0_i32 = arith.constant 0 : i32
    %c0_i32_0 = arith.constant 0 : i32
    %c0_i32_1 = arith.constant 0 : i32
    return %arg0, %c0_i32, %c0_i32_0 : i32, i32, i32
  }
  func.func @transform_2(%arg0: i32) -> (i32, i32, i32) {
    %c0_i32 = arith.constant 0 : i32
    %c0_i32_0 = arith.constant 0 : i32
    %c0_i32_1 = arith.constant 0 : i32
    return %arg0, %c0_i32, %c0_i32_0 : i32, i32, i32
  }
  func.func @transform_3(%arg0: i32) -> (i32, i32) {
    %c0_i32 = arith.constant 0 : i32
    %c0_i32_0 = arith.constant 0 : i32
    %c0_i32_1 = arith.constant 0 : i32
    return %c0_i32, %c0_i32_0 : i32, i32
  }
  func.func @transform_4(%arg0: i32) -> (i32, i32) {
    %c0_i32 = arith.constant 0 : i32
    %c0_i32_0 = arith.constant 0 : i32
    %c0_i32_1 = arith.constant 0 : i32
    return %c0_i32, %c0_i32_0 : i32, i32
  }
  func.func @transform_5(%arg0: i32) -> (i32, i32) {
    %c0_i32 = arith.constant 0 : i32
    %c0_i32_0 = arith.constant 0 : i32
    %c0_i32_1 = arith.constant 0 : i32
    return %c0_i32, %c0_i32_0 : i32, i32
  }
  func.func @transform_6(%arg0: i32) -> (i32, i32) {
    %c0_i32 = arith.constant 0 : i32
    %c0_i32_0 = arith.constant 0 : i32
    %c0_i32_1 = arith.constant 0 : i32
    return %c0_i32, %c0_i32_0 : i32, i32
  }
  func.func @transform_7(%arg0: i32) -> (i32, i32) {
    %c0_i32 = arith.constant 0 : i32
    %c0_i32_0 = arith.constant 0 : i32
    %c0_i32_1 = arith.constant 0 : i32
    return %c0_i32, %c0_i32_0 : i32, i32
  }
  func.func @transform_8(%arg0: i32) -> (i32, i32) {
    %c0_i32 = arith.constant 0 : i32
    %c0_i32_0 = arith.constant 0 : i32
    %c0_i32_1 = arith.constant 0 : i32
    return %c0_i32, %c0_i32_0 : i32, i32
  }
  func.func @transform_9(%arg0: i32) -> (i32, i32) {
    %c0_i32 = arith.constant 0 : i32
    %c0_i32_0 = arith.constant 0 : i32
    %c0_i32_1 = arith.constant 0 : i32
    return %c0_i32, %c0_i32_0 : i32, i32
  }
  func.func @transform_10(%arg0: i32) -> (i32, i32) {
    %c0_i32 = arith.constant 0 : i32
    %c0_i32_0 = arith.constant 0 : i32
    %c0_i32_1 = arith.constant 0 : i32
    return %c0_i32, %c0_i32_0 : i32, i32
  }
  func.func @transform_11(%arg0: i32) -> (i32, i32, i32) {
    %c0_i32 = arith.constant 0 : i32
    %c0_i32_0 = arith.constant 0 : i32
    %c0_i32_1 = arith.constant 0 : i32
    return %arg0, %c0_i32, %c0_i32_0 : i32, i32, i32
  }
}

</mosaic_0001>

<llo_original>
// kernel: tpu_custom_call.1
$region0: #{tpu_custom_call.1}
  #allocation0 [shape = 'u32[]', space=smem, size = 0x4, offset = 0x4, fixed_abs, tag = 'smem constant byte address 0x4 - core index']
  #allocation1 [shape = 'u32[144,128]{1,0:T(1,128)}', space=vmem, size = 0x12000, scoped, tag = 'internal scratch']
  #allocation2 [shape = 'f32[8,64]{1,0:T(8,128)}', space=vmem, size = 0x1000, scoped, tag = 'scratch operand']
  #allocation3 [shape = 'f32[8,64]{1,0:T(8,128)}', space=vmem, size = 0x1000, scoped, tag = 'scratch operand']
  #allocation4 [shape = 'f32[8,64]{1,0:T(8,128)}', space=vmem, size = 0x1000, scoped, tag = 'scratch operand']
  %s0 = inlined_call_operand.hbm [shape: f32[2,8,32], index: 0, kind: input, shape index: {}]
  %s1 = inlined_call_operand.hbm [shape: f32[2,8,32], index: 1, kind: input, shape index: {}]
  %s2 = inlined_call_operand.hbm [shape: f32[2,8,32], index: 2, kind: input, shape index: {}]
  %s3 = inlined_call_operand.vmem [shape: f32[32,64], index: 3, kind: input, shape index: {}]
  %s4 = inlined_call_operand.vmem [shape: f32[1,64], index: 4, kind: input, shape index: {}]
  %s5 = inlined_call_operand.vmem [shape: f32[32,64], index: 5, kind: input, shape index: {}]
  %s6 = inlined_call_operand.vmem [shape: f32[1,64], index: 6, kind: input, shape index: {}]
  %s7 = inlined_call_operand.vmem [shape: f32[32,64], index: 7, kind: input, shape index: {}]
  %s8 = inlined_call_operand.hbm [shape: f32[1,64], index: 8, kind: input, shape index: {}]
  %s9 = inlined_call_operand.vmem [shape: f32[64,32], index: 9, kind: input, shape index: {}]
  %s10 = inlined_call_operand.vmem [shape: f32[1,32], index: 10, kind: input, shape index: {}]
  %s11 = inlined_call_operand.hbm [shape: f32[2,8,32], index: 11, kind: output, shape index: {}]
  %s12 = sld [smem:[#allocation0]]
  $region93: #{tpu_custom_call.1} parent=0
    _
  %s14 = ssub.s32 1, %s12
  %s15 = scalar_select 0, %s14, %s12
  $region1: #{tpu_custom_call.1} parent=0
    #allocation5 [shape = 'u8[8192]{0}', space=vmem, size = 0x2000, scoped, tag = 'input window, operand 0']
    #allocation6 [shape = 's32[2]{0}', space=sflag, size = 0x8, scoped, tag = 'scoped memory for tpu_custom_call.1']
    #allocation7 [shape = 's32[2]{0}', space=sflag, size = 0x8, scoped, tag = 'scoped memory for tpu_custom_call.1']
    #allocation8 [shape = 'u8[8192]{0}', space=vmem, size = 0x2000, scoped, tag = 'input window, operand 1']
    #allocation9 [shape = 's32[2]{0}', space=sflag, size = 0x8, scoped, tag = 'scoped memory for tpu_custom_call.1']
    #allocation10 [shape = 'u8[8192]{0}', space=vmem, size = 0x2000, scoped, tag = 'input window, operand 2']
    #allocation11 [shape = 'u8[512]{0}', space=vmem, size = 0x400, scoped, tag = 'input window, operand 8, single buffered']
    #allocation12 [shape = 's32[1]{0}', space=sflag, size = 0x4, scoped, tag = 'scoped memory for tpu_custom_call.1']
    #allocation13 [shape = 'u8[8192]{0}', space=vmem, size = 0x2000, scoped, tag = 'output window, operand 0']
    %16 = vsyncpa [#allocation6], 0
    %s17 = scalar_lea.sflag [#allocation6], 1
    %18 = vsyncpa %s17, 0
    %19 = vsyncpa [#allocation9], 0
    %s20 = scalar_lea.sflag [#allocation9], 1
    %21 = vsyncpa %s20, 0
    %22 = vsyncpa [#allocation12], 0
    %23 = vsyncpa [#allocation7], 0
    %s24 = scalar_lea.sflag [#allocation7], 1
    %25 = vsyncpa %s24, 0
    loop: start=0, step=1, limit=4
    $region2: #{tpu_custom_call.1} parent=1 // loop_pre_header
      _
    $region3: #{tpu_custom_call.1} parent=1 // loop_header
      %s27 = sphi 0, %s31
      %p28 = scmp.ge.s32.totalorder %s27, 4
      %s37 = sphi 0, %s39
      %s40 = sphi 0, %s37
      %s41 = sphi 0, %s40
      %s57 = sphi 0, %s41
      %s63 = sphi 0, %s65
      %s66 = sphi 0, %s63
      %s67 = sphi 0, %s66
      %s83 = sphi 0, %s67
      %s89 = sphi 0, %s91
      %s92 = sphi 0, %s89
      %s93 = sphi 0, %s92
      %s109 = sphi 0, %s93
      %s113 = sphi 0, %s113
      %s115 = sphi 0, %s113
      %s116 = sphi 0, %s115
      %s130 = sphi 0, %s116
      %s134 = sphi 0, %s134
      %s136 = sphi 0, %s134
      %s137 = sphi 0, %s136
      %s151 = sphi 0, %s137
      %s155 = sphi 0, %s155
      %s157 = sphi 0, %s155
      %s158 = sphi 0, %s157
      %s172 = sphi 0, %s158
      %s176 = sphi 0, %s176
      %s178 = sphi 0, %s176
      %s179 = sphi 0, %s178
      %s193 = sphi 0, %s179
      %s197 = sphi 0, %s197
      %s199 = sphi 0, %s197
      %s200 = sphi 0, %s199
      %s214 = sphi 0, %s200
      %s218 = sphi 0, %s218
      %s220 = sphi 0, %s218
      %s221 = sphi 0, %s220
      %s235 = sphi 0, %s221
      %s239 = sphi 0, %s239
      %s241 = sphi 0, %s239
      %s242 = sphi 0, %s241
      %s256 = sphi 0, %s242
      %s260 = sphi 0, %s260
      %s262 = sphi 0, %s260
      %s263 = sphi 0, %s262
      %s277 = sphi 0, %s263
      %s283 = sphi 0, %s285
      %s286 = sphi 0, %s283
      %s287 = sphi 0, %s286
      %s303 = sphi 0, %s287
    $region4: #{tpu_custom_call.1} parent=1 // loop_header_branch
      %30 = sbr.rel (%p28) target = $region8
    $region5: #{tpu_custom_call.1} parent=1 // loop_body
      %s32 = ssub.s32 %s27, 1
      %s33 = ssub.s32 %s27, 2
      %s34 = sadd.s32 %s27, 1
      %s35 = ssub.s32 %s27, %s34
      %p36 = scmp.eq.s32.totalorder %s35, 0
      %s38 = sadd.s32 %s37, 1
      %s39 = scalar_select %p36, %s37, %s38
      %p42 = pneg %p36
      %p43 = scmp.eq.s32.totalorder %s27, 1
      %p44 = por %p42, %p43
      %p45 = scmp.ne.s32.totalorder %s37, %s40
      %p46 = scmp.eq.s32.totalorder %s27, 0
      %p47 = por %p45, %p46
      %p48 = scmp.ne.s32.totalorder %s37, %s40
      %p49 = scmp.eq.s32.totalorder %s32, 1
      %p50 = por %p48, %p49
      %p51 = scmp.ne.s32.totalorder %s40, %s41
      %p52 = scmp.eq.s32.totalorder %s32, 0
      %p53 = por %p51, %p52
      %p54 = scmp.ne.s32.totalorder %s40, %s41
      %p55 = scmp.eq.s32.totalorder %s33, 1
      %p56 = por %p54, %p55
      %p58 = scmp.ne.s32.totalorder %s41, %s57
      %p59 = scmp.eq.s32.totalorder %s33, 0
      %p60 = por %p58, %p59
      %s61 = ssub.s32 %s27, %s34
      %p62 = scmp.eq.s32.totalorder %s61, 0
      %s64 = sadd.s32 %s63, 1
      %s65 = scalar_select %p62, %s63, %s64
      %p68 = pneg %p62
      %p69 = scmp.eq.s32.totalorder %s27, 1
      %p70 = por %p68, %p69
      %p71 = scmp.ne.s32.totalorder %s63, %s66
      %p72 = scmp.eq.s32.totalorder %s27, 0
      %p73 = por %p71, %p72
      %p74 = scmp.ne.s32.totalorder %s63, %s66
      %p75 = scmp.eq.s32.totalorder %s32, 1
      %p76 = por %p74, %p75
      %p77 = scmp.ne.s32.totalorder %s66, %s67
      %p78 = scmp.eq.s32.totalorder %s32, 0
      %p79 = por %p77, %p78
      %p80 = scmp.ne.s32.totalorder %s66, %s67
      %p81 = scmp.eq.s32.totalorder %s33, 1
      %p82 = por %p80, %p81
      %p84 = scmp.ne.s32.totalorder %s67, %s83
      %p85 = scmp.eq.s32.totalorder %s33, 0
      %p86 = por %p84, %p85
      %s87 = ssub.s32 %s27, %s34
      %p88 = scmp.eq.s32.totalorder %s87, 0
      %s90 = sadd.s32 %s89, 1
      %s91 = scalar_select %p88, %s89, %s90
      %p94 = pneg %p88
      %p95 = scmp.eq.s32.totalorder %s27, 1
      %p96 = por %p94, %p95
      %p97 = scmp.ne.s32.totalorder %s89, %s92
      %p98 = scmp.eq.s32.totalorder %s27, 0
      %p99 = por %p97, %p98
      %p100 = scmp.ne.s32.totalorder %s89, %s92
      %p101 = scmp.eq.s32.totalorder %s32, 1
      %p102 = por %p100, %p101
      %p103 = scmp.ne.s32.totalorder %s92, %s93
      %p104 = scmp.eq.s32.totalorder %s32, 0
      %p105 = por %p103, %p104
      %p106 = scmp.ne.s32.totalorder %s92, %s93
      %p107 = scmp.eq.s32.totalorder %s33, 1
      %p108 = por %p106, %p107
      %p110 = scmp.ne.s32.totalorder %s93, %s109
      %p111 = scmp.eq.s32.totalorder %s33, 0
      %p112 = por %p110, %p111
      %s114 = sadd.s32 %s113, 1
      %p117 = scmp.eq.s32.totalorder %s27, 1
      %p118 = scmp.ne.s32.totalorder %s113, %s115
      %p119 = scmp.eq.s32.totalorder %s27, 0
      %p120 = por %p118, %p119
      %p121 = scmp.ne.s32.totalorder %s113, %s115
      %p122 = scmp.eq.s32.totalorder %s32, 1
      %p123 = por %p121, %p122
      %p124 = scmp.ne.s32.totalorder %s115, %s116
      %p125 = scmp.eq.s32.totalorder %s32, 0
      %p126 = por %p124, %p125
      %p127 = scmp.ne.s32.totalorder %s115, %s116
      %p128 = scmp.eq.s32.totalorder %s33, 1
      %p129 = por %p127, %p128
      %p131 = scmp.ne.s32.totalorder %s116, %s130
      %p132 = scmp.eq.s32.totalorder %s33, 0
      %p133 = por %p131, %p132
      %s135 = sadd.s32 %s134, 1
      %p138 = scmp.eq.s32.totalorder %s27, 1
      %p139 = scmp.ne.s32.totalorder %s134, %s136
      %p140 = scmp.eq.s32.totalorder %s27, 0
      %p141 = por %p139, %p140
      %p142 = scmp.ne.s32.totalorder %s134, %s136
      %p143 = scmp.eq.s32.totalorder %s32, 1
      %p144 = por %p142, %p143
      %p145 = scmp.ne.s32.totalorder %s136, %s137
      %p146 = scmp.eq.s32.totalorder %s32, 0
      %p147 = por %p145, %p146
      %p148 = scmp.ne.s32.totalorder %s136, %s137
      %p149 = scmp.eq.s32.totalorder %s33, 1
      %p150 = por %p148, %p149
      %p152 = scmp.ne.s32.totalorder %s137, %s151
      %p153 = scmp.eq.s32.totalorder %s33, 0
      %p154 = por %p152, %p153
      %s156 = sadd.s32 %s155, 1
      %p159 = scmp.eq.s32.totalorder %s27, 1
      %p160 = scmp.ne.s32.totalorder %s155, %s157
      %p161 = scmp.eq.s32.totalorder %s27, 0
      %p162 = por %p160, %p161
      %p163 = scmp.ne.s32.totalorder %s155, %s157
      %p164 = scmp.eq.s32.totalorder %s32, 1
      %p165 = por %p163, %p164
      %p166 = scmp.ne.s32.totalorder %s157, %s158
      %p167 = scmp.eq.s32.totalorder %s32, 0
      %p168 = por %p166, %p167
      %p169 = scmp.ne.s32.totalorder %s157, %s158
      %p170 = scmp.eq.s32.totalorder %s33, 1
      %p171 = por %p169, %p170
      %p173 = scmp.ne.s32.totalorder %s158, %s172
      %p174 = scmp.eq.s32.totalorder %s33, 0
      %p175 = por %p173, %p174
      %s177 = sadd.s32 %s176, 1
      %p180 = scmp.eq.s32.totalorder %s27, 1
      %p181 = scmp.ne.s32.totalorder %s176, %s178
      %p182 = scmp.eq.s32.totalorder %s27, 0
      %p183 = por %p181, %p182
      %p184 = scmp.ne.s32.totalorder %s176, %s178
      %p185 = scmp.eq.s32.totalorder %s32, 1
      %p186 = por %p184, %p185
      %p187 = scmp.ne.s32.totalorder %s178, %s179
      %p188 = scmp.eq.s32.totalorder %s32, 0
      %p189 = por %p187, %p188
      %p190 = scmp.ne.s32.totalorder %s178, %s179
      %p191 = scmp.eq.s32.totalorder %s33, 1
      %p192 = por %p190, %p191
      %p194 = scmp.ne.s32.totalorder %s179, %s193
      %p195 = scmp.eq.s32.totalorder %s33, 0
      %p196 = por %p194, %p195
      %s198 = sadd.s32 %s197, 1
      %p201 = scmp.eq.s32.totalorder %s27, 1
      %p202 = scmp.ne.s32.totalorder %s197, %s199
      %p203 = scmp.eq.s32.totalorder %s27, 0
      %p204 = por %p202, %p203
      %p205 = scmp.ne.s32.totalorder %s197, %s199
      %p206 = scmp.eq.s32.totalorder %s32, 1
      %p207 = por %p205, %p206
      %p208 = scmp.ne.s32.totalorder %s199, %s200
      %p209 = scmp.eq.s32.totalorder %s32, 0
      %p210 = por %p208, %p209
      %p211 = scmp.ne.s32.totalorder %s199, %s200
      %p212 = scmp.eq.s32.totalorder %s33, 1
      %p213 = por %p211, %p212
      %p215 = scmp.ne.s32.totalorder %s200, %s214
      %p216 = scmp.eq.s32.totalorder %s33, 0
      %p217 = por %p215, %p216
      %s219 = sadd.s32 %s218, 1
      %p222 = scmp.eq.s32.totalorder %s27, 1
      %p223 = scmp.ne.s32.totalorder %s218, %s220
      %p224 = scmp.eq.s32.totalorder %s27, 0
      %p225 = por %p223, %p224
      %p226 = scmp.ne.s32.totalorder %s218, %s220
      %p227 = scmp.eq.s32.totalorder %s32, 1
      %p228 = por %p226, %p227
      %p229 = scmp.ne.s32.totalorder %s220, %s221
      %p230 = scmp.eq.s32.totalorder %s32, 0
      %p231 = por %p229, %p230
      %p232 = scmp.ne.s32.totalorder %s220, %s221
      %p233 = scmp.eq.s32.totalorder %s33, 1
      %p234 = por %p232, %p233
      %p236 = scmp.ne.s32.totalorder %s221, %s235
      %p237 = scmp.eq.s32.totalorder %s33, 0
      %p238 = por %p236, %p237
      %s240 = sadd.s32 %s239, 1
      %p243 = scmp.eq.s32.totalorder %s27, 1
      %p244 = scmp.ne.s32.totalorder %s239, %s241
      %p245 = scmp.eq.s32.totalorder %s27, 0
      %p246 = por %p244, %p245
      %p247 = scmp.ne.s32.totalorder %s239, %s241
      %p248 = scmp.eq.s32.totalorder %s32, 1
      %p249 = por %p247, %p248
      %p250 = scmp.ne.s32.totalorder %s241, %s242
      %p251 = scmp.eq.s32.totalorder %s32, 0
      %p252 = por %p250, %p251
      %p253 = scmp.ne.s32.totalorder %s241, %s242
      %p254 = scmp.eq.s32.totalorder %s33, 1
      %p255 = por %p253, %p254
      %p257 = scmp.ne.s32.totalorder %s242, %s256
      %p258 = scmp.eq.s32.totalorder %s33, 0
      %p259 = por %p257, %p258
      %s261 = sadd.s32 %s260, 1
      %p264 = scmp.eq.s32.totalorder %s27, 1
      %p265 = scmp.ne.s32.totalorder %s260, %s262
      %p266 = scmp.eq.s32.totalorder %s27, 0
      %p267 = por %p265, %p266
      %p268 = scmp.ne.s32.totalorder %s260, %s262
      %p269 = scmp.eq.s32.totalorder %s32, 1
      %p270 = por %p268, %p269
      %p271 = scmp.ne.s32.totalorder %s262, %s263
      %p272 = scmp.eq.s32.totalorder %s32, 0
      %p273 = por %p271, %p272
      %p274 = scmp.ne.s32.totalorder %s262, %s263
      %p275 = scmp.eq.s32.totalorder %s33, 1
      %p276 = por %p274, %p275
      %p278 = scmp.ne.s32.totalorder %s263, %s277
      %p279 = scmp.eq.s32.totalorder %s33, 0
      %p280 = por %p278, %p279
      %s281 = ssub.s32 %s27, %s34
      %p282 = scmp.eq.s32.totalorder %s281, 0
      %s284 = sadd.s32 %s283, 1
      %s285 = scalar_select %p282, %s283, %s284
      %p288 = pneg %p282
      %p289 = scmp.eq.s32.totalorder %s27, 1
      %p290 = por %p288, %p289
      %p291 = scmp.ne.s32.totalorder %s283, %s286
      %p292 = scmp.eq.s32.totalorder %s27, 0
      %p293 = por %p291, %p292
      %p294 = scmp.ne.s32.totalorder %s283, %s286
      %p295 = scmp.eq.s32.totalorder %s32, 1
      %p296 = por %p294, %p295
      %p297 = scmp.ne.s32.totalorder %s286, %s287
      %p298 = scmp.eq.s32.totalorder %s32, 0
      %p299 = por %p297, %p298
      %p300 = scmp.ne.s32.totalorder %s286, %s287
      %p301 = scmp.eq.s32.totalorder %s33, 1
      %p302 = por %p300, %p301
      %p304 = scmp.ne.s32.totalorder %s287, %s303
      %p305 = scmp.eq.s32.totalorder %s33, 0
      %p306 = por %p304, %p305
      %p307 = scmp.le.s32.totalorder 1, %s27
      %p308 = scmp.lt.s32.totalorder %s27, 3
      %p309 = pnand %p307, %p308
      %p310 = pneg %p309
      // Predicated region
      $region9: #{tpu_custom_call.1} parent=5 // pred_check
        _
      $region10: #{tpu_custom_call.1} parent=5 // pred_check_branch
        %312 = sbr.rel (%p309) target = $region12
      $region11: #{tpu_custom_call.1} parent=5 // pred_region
        %s313 = ssub.s32 %s27, 1
        // Predicated region
        $region13: #{tpu_custom_call.1} parent=11 // pred_check
          %p314 = pneg %p126
        $region14: #{tpu_custom_call.1} parent=11 // pred_check_branch
          %316 = sbr.rel (%p314) target = $region16
        $region15: #{tpu_custom_call.1} parent=11 // pred_region
          _
        $region16: #{tpu_custom_call.1} parent=11 // pred_fallthru
          _
        // Predicated region
        $region17: #{tpu_custom_call.1} parent=11 // pred_check
          %p317 = pneg %p147
        $region18: #{tpu_custom_call.1} parent=11 // pred_check_branch
          %319 = sbr.rel (%p317) target = $region20
        $region19: #{tpu_custom_call.1} parent=11 // pred_region
          _
        $region20: #{tpu_custom_call.1} parent=11 // pred_fallthru
          _
        // Predicated region
        $region21: #{tpu_custom_call.1} parent=11 // pred_check
          %p320 = pneg %p168
        $region22: #{tpu_custom_call.1} parent=11 // pred_check_branch
          %322 = sbr.rel (%p320) target = $region24
        $region23: #{tpu_custom_call.1} parent=11 // pred_region
          _
        $region24: #{tpu_custom_call.1} parent=11 // pred_fallthru
          _
        // Predicated region
        $region25: #{tpu_custom_call.1} parent=11 // pred_check
          %p323 = pneg %p189
        $region26: #{tpu_custom_call.1} parent=11 // pred_check_branch
          %325 = sbr.rel (%p323) target = $region28
        $region27: #{tpu_custom_call.1} parent=11 // pred_region
          _
        $region28: #{tpu_custom_call.1} parent=11 // pred_fallthru
          _
        // Predicated region
        $region29: #{tpu_custom_call.1} parent=11 // pred_check
          %p326 = pneg %p210
        $region30: #{tpu_custom_call.1} parent=11 // pred_check_branch
          %328 = sbr.rel (%p326) target = $region32
        $region31: #{tpu_custom_call.1} parent=11 // pred_region
          _
        $region32: #{tpu_custom_call.1} parent=11 // pred_fallthru
          _
        // Predicated region
        $region33: #{tpu_custom_call.1} parent=11 // pred_check
          %p329 = pneg %p231
        $region34: #{tpu_custom_call.1} parent=11 // pred_check_branch
          %331 = sbr.rel (%p329) target = $region36
        $region35: #{tpu_custom_call.1} parent=11 // pred_region
          %s333 = ssub.s32 16, 16
          %334 = vsyncadd [#allocation12], %s333
          %s336 = sshll.u32 [#allocation11], 4
          %s337 = int_to_ptr.vmem [resolvable:$true] %s336
          %339 = dma.hbm_to_vmem [thread:$0]  %s8, 16, %s337, [#allocation12]
        $region36: #{tpu_custom_call.1} parent=11 // pred_fallthru
          _
        // Predicated region
        $region37: #{tpu_custom_call.1} parent=11 // pred_check
          %p340 = pneg %p252
        $region38: #{tpu_custom_call.1} parent=11 // pred_check_branch
          %342 = sbr.rel (%p340) target = $region40
        $region39: #{tpu_custom_call.1} parent=11 // pred_region
          _
        $region40: #{tpu_custom_call.1} parent=11 // pred_fallthru
          _
        // Predicated region
        $region41: #{tpu_custom_call.1} parent=11 // pred_check
          %p343 = pneg %p273
        $region42: #{tpu_custom_call.1} parent=11 // pred_check_branch
          %345 = sbr.rel (%p343) target = $region44
        $region43: #{tpu_custom_call.1} parent=11 // pred_region
          _
        $region44: #{tpu_custom_call.1} parent=11 // pred_fallthru
          _
      $region12: #{tpu_custom_call.1} parent=5 // pred_fallthru
        _
      %p346 = scmp.lt.s32.totalorder %s27, 2
      // Predicated region
      $region45: #{tpu_custom_call.1} parent=5 // pred_check
        %p347 = pneg %p346
      $region46: #{tpu_custom_call.1} parent=5 // pred_check_branch
        %349 = sbr.rel (%p347) target = $region48
      $region47: #{tpu_custom_call.1} parent=5 // pred_region
        // Predicated region
        $region49: #{tpu_custom_call.1} parent=47 // pred_check
          %p350 = pneg %p47
        $region50: #{tpu_custom_call.1} parent=47 // pred_check_branch
          %352 = sbr.rel (%p350) target = $region52
        $region51: #{tpu_custom_call.1} parent=47 // pred_region
          %s353 = sand.u32 %s37, 1
          %s354 = scalar_lea.sflag [#allocation6], %s353
          %s355 = sand.u32 %s37, 1
          %s356 = smul.addr %s355, 8
          %s357 = scalar_lea.vmem [#allocation5], %s356
          %s359 = ssub.s32 128, 128
          %360 = vsyncadd %s354, %s359
          %s361 = smul.addr %s27, 128
          %s362 = scalar_lea.hbm %s0, %s361
          %s364 = sshll.u32 %s357, 4
          %s365 = int_to_ptr.vmem [resolvable:$true] %s364
          %367 = dma.hbm_to_vmem [thread:$0]  %s362, 128, %s365, %s354
        $region52: #{tpu_custom_call.1} parent=47 // pred_fallthru
          _
        // Predicated region
        $region53: #{tpu_custom_call.1} parent=47 // pred_check
          %p368 = pneg %p73
        $region54: #{tpu_custom_call.1} parent=47 // pred_check_branch
          %370 = sbr.rel (%p368) target = $region56
        $region55: #{tpu_custom_call.1} parent=47 // pred_region
          %s371 = sand.u32 %s27, 1
          %s372 = scalar_lea.sflag [#allocation9], %s371
          %s373 = sand.u32 %s63, 1
          %s374 = smul.addr %s373, 8
          %s375 = scalar_lea.vmem [#allocation8], %s374
          %s377 = ssub.s32 128, 128
          %378 = vsyncadd %s372, %s377
          %s379 = smul.addr %s27, 128
          %s380 = scalar_lea.hbm %s1, %s379
          %s382 = sshll.u32 %s375, 4
          %s383 = int_to_ptr.vmem [resolvable:$true] %s382
          %385 = dma.hbm_to_vmem [thread:$0]  %s380, 128, %s383, %s372
        $region56: #{tpu_custom_call.1} parent=47 // pred_fallthru
          _
        // Predicated region
        $region57: #{tpu_custom_call.1} parent=47 // pred_check
          %p386 = pneg %p99
        $region58: #{tpu_custom_call.1} parent=47 // pred_check_branch
          %388 = sbr.rel (%p386) target = $region60
        $region59: #{tpu_custom_call.1} parent=47 // pred_region
          %s389 = sand.u32 %s27, 1
          %s390 = scalar_lea.sflag [#allocation9], %s389
          %s391 = sand.u32 %s89, 1
          %s392 = smul.addr %s391, 8
          %s393 = scalar_lea.vmem [#allocation10], %s392
          %s395 = ssub.s32 128, 128
          %396 = vsyncadd %s390, %s395
          %s397 = smul.addr %s27, 128
          %s398 = scalar_lea.hbm %s2, %s397
          %s400 = sshll.u32 %s393, 4
          %s401 = int_to_ptr.vmem [resolvable:$true] %s400
          %403 = dma.hbm_to_vmem [thread:$0]  %s398, 128, %s401, %s390
        $region60: #{tpu_custom_call.1} parent=47 // pred_fallthru
          _
      $region48: #{tpu_custom_call.1} parent=5 // pred_fallthru
        _
      %p404 = scmp.le.s32.totalorder 1, %s27
      %p405 = scmp.lt.s32.totalorder %s27, 3
      %p406 = pnand %p404, %p405
      %p407 = pneg %p406
      // Predicated region
      $region61: #{tpu_custom_call.1} parent=5 // pred_check
        _
      $region62: #{tpu_custom_call.1} parent=5 // pred_check_branch
        %409 = sbr.rel (%p406) target = $region64
      $region63: #{tpu_custom_call.1} parent=5 // pred_region
        %s410 = ssub.s32 %s27, 1
        %s411 = sand.u32 %s40, 1
        %s412 = scalar_lea.sflag [#allocation6], %s411
        %s413 = sand.u32 %s40, 1
        %s414 = smul.addr %s413, 8
        %s415 = scalar_lea.vmem [#allocation5], %s414
        // Predicated region
        $region65: #{tpu_custom_call.1} parent=63 // pred_check
          %p416 = pneg %p53
        $region66: #{tpu_custom_call.1} parent=63 // pred_check_branch
          %418 = sbr.rel (%p416) target = $region68
        $region67: #{tpu_custom_call.1} parent=63 // pred_region
          %419 = dma.done %s412, 128
        $region68: #{tpu_custom_call.1} parent=63 // pred_fallthru
          _
        %s420 = sand.u32 %s32, 1
        %s421 = scalar_lea.sflag [#allocation9], %s420
        %s422 = sand.u32 %s66, 1
        %s423 = smul.addr %s422, 8
        %s424 = scalar_lea.vmem [#allocation8], %s423
        // Predicated region
        $region69: #{tpu_custom_call.1} parent=63 // pred_check
          %p425 = pneg %p79
        $region70: #{tpu_custom_call.1} parent=63 // pred_check_branch
          %427 = sbr.rel (%p425) target = $region72
        $region71: #{tpu_custom_call.1} parent=63 // pred_region
          %428 = dma.done %s421, 128
        $region72: #{tpu_custom_call.1} parent=63 // pred_fallthru
          _
        %s429 = sand.u32 %s32, 1
        %s430 = scalar_lea.sflag [#allocation9], %s429
        %s431 = sand.u32 %s92, 1
        %s432 = smul.addr %s431, 8
        %s433 = scalar_lea.vmem [#allocation10], %s432
        // Predicated region
        $region73: #{tpu_custom_call.1} parent=63 // pred_check
          %p434 = pneg %p105
        $region74: #{tpu_custom_call.1} parent=63 // pred_check_branch
          %436 = sbr.rel (%p434) target = $region76
        $region75: #{tpu_custom_call.1} parent=63 // pred_region
          %437 = dma.done %s430, 128
        $region76: #{tpu_custom_call.1} parent=63 // pred_fallthru
          _
        // Predicated region
        $region77: #{tpu_custom_call.1} parent=63 // pred_check
          %p438 = pneg %p231
        $region78: #{tpu_custom_call.1} parent=63 // pred_check_branch
          %440 = sbr.rel (%p438) target = $region80
        $region79: #{tpu_custom_call.1} parent=63 // pred_region
          %441 = dma.done [#allocation12], 16
        $region80: #{tpu_custom_call.1} parent=63 // pred_fallthru
          _
        %s442 = sand.u32 %s40, 1
        %s443 = scalar_lea.sflag [#allocation6], %s442
        %s444 = sand.u32 %s40, 1
        %s445 = smul.addr %s444, 8
        %s446 = scalar_lea.vmem [#allocation5], %s445
        %p447 = pneg %p53
        %p448 = pneg %p50
        %s449 = sand.u32 %s32, 1
        %s450 = scalar_lea.sflag [#allocation9], %s449
        %s451 = sand.u32 %s66, 1
        %s452 = smul.addr %s451, 8
        %s453 = scalar_lea.vmem [#allocation8], %s452
        %p454 = pneg %p79
        %p455 = pneg %p76
        %s456 = sand.u32 %s32, 1
        %s457 = scalar_lea.sflag [#allocation9], %s456
        %s458 = sand.u32 %s92, 1
        %s459 = smul.addr %s458, 8
        %s460 = scalar_lea.vmem [#allocation10], %s459
        %p461 = pneg %p105
        %p462 = pneg %p102
        %p463 = pneg %p126
        %p464 = pneg %p123
        %p465 = pneg %p147
        %p466 = pneg %p144
        %p467 = pneg %p168
        %p468 = pneg %p165
        %p469 = pneg %p189
        %p470 = pneg %p186
        %p471 = pneg %p210
        %p472 = pneg %p207
        %p473 = pneg %p231
        %p474 = pneg %p228
        %p475 = pneg %p252
        %p476 = pneg %p249
        %p477 = pneg %p273
        %p478 = pneg %p270
        %p479 = pneg %p299
        %p480 = pneg %p296
        %s481 = sand.u32 %s286, 1
        %s482 = scalar_lea.sflag [#allocation7], %s481
        %s483 = sand.u32 %s286, 1
        %s484 = smul.addr %s483, 8
        %s485 = scalar_lea.vmem [#allocation13], %s484
        %v486 = vld [vmem:[%s415] sm:$0xff]
        %v487 = vld [vmem:[%s3] sm:$0xff]
        %v488 = vld [vmem:[%s3 + $0x8] sm:$0xff]
        %v489 = vld [vmem:[%s3 + $0x10] sm:$0xff]
        %v490 = vld [vmem:[%s3 + $0x18] sm:$0xff]
        %v491 = vld [vmem:[%s4] sm:$0x1]
        %v493 = vlaneseq
        %v494 = vshrl.u32 %v493, 7
        %v495 = vsub.s32 0, %v494
        %v496 = vrot.slane %v491, %v495
        %vm498 = vcmask 261120
        %v500 = vsel %vm498, %v486, 0
        %502 = vmatprep.subr.mxu0 0.0
        %503 = vmatpush1.msra.mxu0 %v487
        %504 = vmatprep.subr.mxu0 0.0
        %505 = vmatpush1.msra.mxu0 %v488
        %506 = vmatprep.subr.mxu0 0.0
        %507 = vmatpush1.msra.mxu0 %v489
        %508 = vmatprep.subr.mxu0 0.0
        %509 = vmatpush1.msra.mxu0 %v490
        %510 = vmatprep.subr.mxu0 0.0
        %511 = vmatpush1.msra.mxu0 0.0
        %512 = vmatprep.subr.mxu0 0.0
        %513 = vmatpush1.msra.mxu0 0.0
        %514 = vmatprep.subr.mxu0 0.0
        %515 = vmatpush1.msra.mxu0 0.0
        %516 = vmatprep.subr.mxu0 0.0
        %517 = vmatpush1.msra.mxu0 0.0
        %518 = vmatprep.subr.mxu0 0.0
        %519 = vmatpush1.msra.mxu0 0.0
        %520 = vmatprep.subr.mxu0 0.0
        %521 = vmatpush1.msra.mxu0 0.0
        %522 = vmatprep.subr.mxu0 0.0
        %523 = vmatpush1.msra.mxu0 0.0
        %524 = vmatprep.subr.mxu0 0.0
        %525 = vmatpush1.msra.mxu0 0.0
        %526 = vmatprep.subr.mxu0 0.0
        %527 = vmatpush1.msra.mxu0 0.0
        %528 = vmatprep.subr.mxu0 0.0
        %529 = vmatpush1.msra.mxu0 0.0
        %530 = vmatprep.subr.mxu0 0.0
        %531 = vmatpush1.msra.mxu0 0.0
        %532 = vmatprep.subr.mxu0 0.0
        %533 = vmatpush1.msra.mxu0 0.0
        %534 = vmatprep.subr.mxu0 0.0
        %535 = vmatpush1.msra.mxu0 0.0
        %536 = vmatprep.subr.mxu0 0.0
        %537 = vmatpush1.msra.mxu0 0.0
        %538 = vmatprep.subr.mxu0 0.0
        %539 = vmatpush1.msra.mxu0 0.0
        %540 = vmatprep.subr.mxu0 0.0
        %541 = vmatpush1.msra.mxu0 0.0
        %542 = vmatprep.subr.mxu0 0.0
        %543 = vmatpush1.msra.mxu0 0.0
        %544 = vmatprep.subr.mxu0 0.0
        %545 = vmatpush1.msra.mxu0 0.0
        %546 = vmatprep.subr.mxu0 0.0
        %547 = vmatpush1.msra.mxu0 0.0
        %548 = vmatprep.subr.mxu0 0.0
        %549 = vmatpush1.msra.mxu0 0.0
        %550 = vmatprep.subr.mxu0 0.0
        %551 = vmatpush1.msra.mxu0 0.0
        %552 = vmatprep.subr.mxu0 0.0
        %553 = vmatpush1.msra.mxu0 0.0
        %554 = vmatprep.subr.mxu0 0.0
        %555 = vmatpush1.msra.mxu0 0.0
        %556 = vmatprep.subr.mxu0 0.0
        %557 = vmatpush1.msra.mxu0 0.0
        %558 = vmatprep.subr.mxu0 0.0
        %559 = vmatpush1.msra.mxu0 0.0
        %560 = vmatprep.subr.mxu0 0.0
        %561 = vmatpush1.msra.mxu0 0.0
        %562 = vmatprep.subr.mxu0 0.0
        %563 = vmatpush1.msra.mxu0 0.0
        %564 = vmatprep.subr.mxu0 0.0
        %565 = vmatpush1.msra.mxu0 0.0
        %566 = vmatprep.mubr.f32.mxu0 0.0
        %567 = vmatmul.mubr.f32.gmra.mrb[0].mxu0 %v500
        %v568 = vpop.f32.mrb[0].mxu0
        %v569 = vadd.f32 %v496, %v568
        %v570 = vpop.f32.mrb[0].mxu0
        %571 = vdwg.mxu0
        %v572 = vmul.f32 %v569, 0.25
        %vm573 = vcmask 523264
        %574 = vst.msk [vmem:[#allocation2] sm:$0xff] %vm573, %v572
        %v575 = vld [vmem:[%s424] sm:$0xff]
        %v576 = vld [vmem:[%s5] sm:$0xff]
        %v577 = vld [vmem:[%s5 + $0x8] sm:$0xff]
        %v578 = vld [vmem:[%s5 + $0x10] sm:$0xff]
        %v579 = vld [vmem:[%s5 + $0x18] sm:$0xff]
        %v580 = vld [vmem:[%s6] sm:$0x1]
        %v582 = vlaneseq
        %v583 = vshrl.u32 %v582, 7
        %v584 = vsub.s32 0, %v583
        %v585 = vrot.slane %v580, %v584
        %v588 = vsel %vm498, %v575, 0
        %590 = vmatprep.subr.mxu0 0.0
        %591 = vmatpush1.msra.mxu0 %v576
        %592 = vmatprep.subr.mxu0 0.0
        %593 = vmatpush1.msra.mxu0 %v577
        %594 = vmatprep.subr.mxu0 0.0
        %595 = vmatpush1.msra.mxu0 %v578
        %596 = vmatprep.subr.mxu0 0.0
        %597 = vmatpush1.msra.mxu0 %v579
        %598 = vmatprep.subr.mxu0 0.0
        %599 = vmatpush1.msra.mxu0 0.0
        %600 = vmatprep.subr.mxu0 0.0
        %601 = vmatpush1.msra.mxu0 0.0
        %602 = vmatprep.subr.mxu0 0.0
        %603 = vmatpush1.msra.mxu0 0.0
        %604 = vmatprep.subr.mxu0 0.0
        %605 = vmatpush1.msra.mxu0 0.0
        %606 = vmatprep.subr.mxu0 0.0
        %607 = vmatpush1.msra.mxu0 0.0
        %608 = vmatprep.subr.mxu0 0.0
        %609 = vmatpush1.msra.mxu0 0.0
        %610 = vmatprep.subr.mxu0 0.0
        %611 = vmatpush1.msra.mxu0 0.0
        %612 = vmatprep.subr.mxu0 0.0
        %613 = vmatpush1.msra.mxu0 0.0
        %614 = vmatprep.subr.mxu0 0.0
        %615 = vmatpush1.msra.mxu0 0.0
        %616 = vmatprep.subr.mxu0 0.0
        %617 = vmatpush1.msra.mxu0 0.0
        %618 = vmatprep.subr.mxu0 0.0
        %619 = vmatpush1.msra.mxu0 0.0
        %620 = vmatprep.subr.mxu0 0.0
        %621 = vmatpush1.msra.mxu0 0.0
        %622 = vmatprep.subr.mxu0 0.0
        %623 = vmatpush1.msra.mxu0 0.0
        %624 = vmatprep.subr.mxu0 0.0
        %625 = vmatpush1.msra.mxu0 0.0
        %626 = vmatprep.subr.mxu0 0.0
        %627 = vmatpush1.msra.mxu0 0.0
        %628 = vmatprep.subr.mxu0 0.0
        %629 = vmatpush1.msra.mxu0 0.0
        %630 = vmatprep.subr.mxu0 0.0
        %631 = vmatpush1.msra.mxu0 0.0
        %632 = vmatprep.subr.mxu0 0.0
        %633 = vmatpush1.msra.mxu0 0.0
        %634 = vmatprep.subr.mxu0 0.0
        %635 = vmatpush1.msra.mxu0 0.0
        %636 = vmatprep.subr.mxu0 0.0
        %637 = vmatpush1.msra.mxu0 0.0
        %638 = vmatprep.subr.mxu0 0.0
        %639 = vmatpush1.msra.mxu0 0.0
        %640 = vmatprep.subr.mxu0 0.0
        %641 = vmatpush1.msra.mxu0 0.0
        %642 = vmatprep.subr.mxu0 0.0
        %643 = vmatpush1.msra.mxu0 0.0
        %644 = vmatprep.subr.mxu0 0.0
        %645 = vmatpush1.msra.mxu0 0.0
        %646 = vmatprep.subr.mxu0 0.0
        %647 = vmatpush1.msra.mxu0 0.0
        %648 = vmatprep.subr.mxu0 0.0
        %649 = vmatpush1.msra.mxu0 0.0
        %650 = vmatprep.subr.mxu0 0.0
        %651 = vmatpush1.msra.mxu0 0.0
        %652 = vmatprep.subr.mxu0 0.0
        %653 = vmatpush1.msra.mxu0 0.0
        %654 = vmatprep.mubr.f32.mxu0 0.0
        %655 = vmatmul.mubr.f32.gmra.mrb[0].mxu0 %v588
        %v656 = vpop.f32.mrb[0].mxu0
        %v657 = vadd.f32 %v585, %v656
        %v658 = vpop.f32.mrb[0].mxu0
        %659 = vdwg.mxu0
        %660 = vst.msk [vmem:[#allocation3] sm:$0xff] %vm573, %v657
        %v661 = vld [vmem:[%s433] sm:$0xff]
        %v662 = vld [vmem:[%s7] sm:$0xff]
        %v663 = vld [vmem:[%s7 + $0x8] sm:$0xff]
        %v664 = vld [vmem:[%s7 + $0x10] sm:$0xff]
        %v665 = vld [vmem:[%s7 + $0x18] sm:$0xff]
        %v666 = vld [vmem:[#allocation11] sm:$0x1]
        %v668 = vlaneseq
        %v669 = vshrl.u32 %v668, 7
        %v670 = vsub.s32 0, %v669
        %v671 = vrot.slane %v666, %v670
        %v674 = vsel %vm498, %v661, 0
        %676 = vmatprep.subr.mxu0 0.0
        %677 = vmatpush1.msra.mxu0 %v662
        %678 = vmatprep.subr.mxu0 0.0
        %679 = vmatpush1.msra.mxu0 %v663
        %680 = vmatprep.subr.mxu0 0.0
        %681 = vmatpush1.msra.mxu0 %v664
        %682 = vmatprep.subr.mxu0 0.0
        %683 = vmatpush1.msra.mxu0 %v665
        %684 = vmatprep.subr.mxu0 0.0
        %685 = vmatpush1.msra.mxu0 0.0
        %686 = vmatprep.subr.mxu0 0.0
        %687 = vmatpush1.msra.mxu0 0.0
        %688 = vmatprep.subr.mxu0 0.0
        %689 = vmatpush1.msra.mxu0 0.0
        %690 = vmatprep.subr.mxu0 0.0
        %691 = vmatpush1.msra.mxu0 0.0
        %692 = vmatprep.subr.mxu0 0.0
        %693 = vmatpush1.msra.mxu0 0.0
        %694 = vmatprep.subr.mxu0 0.0
        %695 = vmatpush1.msra.mxu0 0.0
        %696 = vmatprep.subr.mxu0 0.0
        %697 = vmatpush1.msra.mxu0 0.0
        %698 = vmatprep.subr.mxu0 0.0
        %699 = vmatpush1.msra.mxu0 0.0
        %700 = vmatprep.subr.mxu0 0.0
        %701 = vmatpush1.msra.mxu0 0.0
        %702 = vmatprep.subr.mxu0 0.0
        %703 = vmatpush1.msra.mxu0 0.0
        %704 = vmatprep.subr.mxu0 0.0
        %705 = vmatpush1.msra.mxu0 0.0
        %706 = vmatprep.subr.mxu0 0.0
        %707 = vmatpush1.msra.mxu0 0.0
        %708 = vmatprep.subr.mxu0 0.0
        %709 = vmatpush1.msra.mxu0 0.0
        %710 = vmatprep.subr.mxu0 0.0
        %711 = vmatpush1.msra.mxu0 0.0
        %712 = vmatprep.subr.mxu0 0.0
        %713 = vmatpush1.msra.mxu0 0.0
        %714 = vmatprep.subr.mxu0 0.0
        %715 = vmatpush1.msra.mxu0 0.0
        %716 = vmatprep.subr.mxu0 0.0
        %717 = vmatpush1.msra.mxu0 0.0
        %718 = vmatprep.subr.mxu0 0.0
        %719 = vmatpush1.msra.mxu0 0.0
        %720 = vmatprep.subr.mxu0 0.0
        %721 = vmatpush1.msra.mxu0 0.0
        %722 = vmatprep.subr.mxu0 0.0
        %723 = vmatpush1.msra.mxu0 0.0
        %724 = vmatprep.subr.mxu0 0.0
        %725 = vmatpush1.msra.mxu0 0.0
        %726 = vmatprep.subr.mxu0 0.0
        %727 = vmatpush1.msra.mxu0 0.0
        %728 = vmatprep.subr.mxu0 0.0
        %729 = vmatpush1.msra.mxu0 0.0
        %730 = vmatprep.subr.mxu0 0.0
        %731 = vmatpush1.msra.mxu0 0.0
        %732 = vmatprep.subr.mxu0 0.0
        %733 = vmatpush1.msra.mxu0 0.0
        %734 = vmatprep.subr.mxu0 0.0
        %735 = vmatpush1.msra.mxu0 0.0
        %736 = vmatprep.subr.mxu0 0.0
        %737 = vmatpush1.msra.mxu0 0.0
        %738 = vmatprep.subr.mxu0 0.0
        %739 = vmatpush1.msra.mxu0 0.0
        %740 = vmatprep.mubr.f32.mxu0 0.0
        %741 = vmatmul.mubr.f32.gmra.mrb[0].mxu0 %v674
        %v742 = vpop.f32.mrb[0].mxu0
        %v743 = vadd.f32 %v671, %v742
        %v744 = vpop.f32.mrb[0].mxu0
        %745 = vdwg.mxu0
        %746 = vst.msk [vmem:[#allocation4] sm:$0xff] %vm573, %v743
        %v747 = vlaneseq
        %v748 = vshrl.u32 %v747, 7
        %v749 = vlaneseq
        %v750 = vand.u32 %v749, 127
        %vm751 = vcmp.lt.s32.totalorder %v748, %v750
        %v752 = vld [vmem:[#allocation2] sm:$0xff]
        %v753 = vld [vmem:[#allocation3] sm:$0xff]
        %v754 = vld [vmem:[#allocation4] sm:$0xff]
        %vm755 = vcmask 130048
        %v757 = vsel %vm755, %v752, 0
        %v760 = vsel %vm755, %v753, 0
        %762 = vmatprep.subr.mxu0 0.0
        %763 = vmatpush1.xpose.msra.mxu0 %v760
        %764 = vmatprep.subr.mxu0 0.0
        %765 = vmatpush1.xpose.msra.mxu0 0.0
        %766 = vmatprep.subr.mxu0 0.0
        %767 = vmatpush1.xpose.msra.mxu0 0.0
        %768 = vmatprep.subr.mxu0 0.0
        %769 = vmatpush1.xpose.msra.mxu0 0.0
        %770 = vmatprep.subr.mxu0 0.0
        %771 = vmatpush1.xpose.msra.mxu0 0.0
        %772 = vmatprep.subr.mxu0 0.0
        %773 = vmatpush1.xpose.msra.mxu0 0.0
        %774 = vmatprep.subr.mxu0 0.0
        %775 = vmatpush1.xpose.msra.mxu0 0.0
        %776 = vmatprep.subr.mxu0 0.0
        %777 = vmatpush1.xpose.msra.mxu0 0.0
        %778 = vmatprep.subr.mxu0 0.0
        %779 = vmatpush1.xpose.msra.mxu0 0.0
        %780 = vmatprep.subr.mxu0 0.0
        %781 = vmatpush1.xpose.msra.mxu0 0.0
        %782 = vmatprep.subr.mxu0 0.0
        %783 = vmatpush1.xpose.msra.mxu0 0.0
        %784 = vmatprep.subr.mxu0 0.0
        %785 = vmatpush1.xpose.msra.mxu0 0.0
        %786 = vmatprep.subr.mxu0 0.0
        %787 = vmatpush1.xpose.msra.mxu0 0.0
        %788 = vmatprep.subr.mxu0 0.0
        %789 = vmatpush1.xpose.msra.mxu0 0.0
        %790 = vmatprep.subr.mxu0 0.0
        %791 = vmatpush1.xpose.msra.mxu0 0.0
        %792 = vmatprep.subr.mxu0 0.0
        %793 = vmatpush1.xpose.msra.mxu0 0.0
        %794 = vmatprep.subr.mxu0 0.0
        %795 = vmatpush1.xpose.msra.mxu0 0.0
        %796 = vmatprep.subr.mxu0 0.0
        %797 = vmatpush1.xpose.msra.mxu0 0.0
        %798 = vmatprep.subr.mxu0 0.0
        %799 = vmatpush1.xpose.msra.mxu0 0.0
        %800 = vmatprep.subr.mxu0 0.0
        %801 = vmatpush1.xpose.msra.mxu0 0.0
        %802 = vmatprep.subr.mxu0 0.0
        %803 = vmatpush1.xpose.msra.mxu0 0.0
        %804 = vmatprep.subr.mxu0 0.0
        %805 = vmatpush1.xpose.msra.mxu0 0.0
        %806 = vmatprep.subr.mxu0 0.0
        %807 = vmatpush1.xpose.msra.mxu0 0.0
        %808 = vmatprep.subr.mxu0 0.0
        %809 = vmatpush1.xpose.msra.mxu0 0.0
        %810 = vmatprep.subr.mxu0 0.0
        %811 = vmatpush1.xpose.msra.mxu0 0.0
        %812 = vmatprep.subr.mxu0 0.0
        %813 = vmatpush1.xpose.msra.mxu0 0.0
        %814 = vmatprep.subr.mxu0 0.0
        %815 = vmatpush1.xpose.msra.mxu0 0.0
        %816 = vmatprep.subr.mxu0 0.0
        %817 = vmatpush1.xpose.msra.mxu0 0.0
        %818 = vmatprep.subr.mxu0 0.0
        %819 = vmatpush1.xpose.msra.mxu0 0.0
        %820 = vmatprep.subr.mxu0 0.0
        %821 = vmatpush1.xpose.msra.mxu0 0.0
        %822 = vmatprep.subr.mxu0 0.0
        %823 = vmatpush1.xpose.msra.mxu0 0.0
        %824 = vmatprep.subr.mxu0 0.0
        %825 = vmatpush1.xpose.msra.mxu0 0.0
        %826 = vmatprep.mubr.f32.mxu0 0.0
        %827 = vmatmul.mubr.f32.gmra.mrb[0].mxu0 %v757
        %v828 = vpop.f32.mrb[0].mxu0
        %v829 = vadd.f32 0.0, %v828
        %v830 = vpop.f32.mrb[0].mxu0
        %831 = vdwg.mxu0
        %v832 = vsel %vm751, -1e+12, %v829
        %vm833 = vcmask 64512
        %v834 = vsel %vm833, %v832, -inf
        %835 = vmax.xlane.f32.xlu0 %v834
        %v836 = vpop.xlane.xlu0 %835
        %v837 = vsub.f32 %v832, %v836
        %v838 = vmul.f32 %v837, 1.442695
        %v839 = vpow.pop %v838
        %v840 = vsel %vm833, %v839, 0.0
        %841 = vadd.xlane.f32.xlu0 %v840
        %v842 = vpop.xlane.xlu0 %841
        %v843 = vrcp.pop %v842
        %v844 = vmul.f32 %v839, %v843
        %v846 = vsel %vm833, %v844, 0
        %848 = vmatprep.subr.mxu0 0.0
        %849 = vmatpush1.msra.mxu0 %v754
        %850 = vmatprep.subr.mxu0 0.0
        %851 = vmatpush1.msra.mxu0 0.0
        %852 = vmatprep.subr.mxu0 0.0
        %853 = vmatpush1.msra.mxu0 0.0
        %854 = vmatprep.subr.mxu0 0.0
        %855 = vmatpush1.msra.mxu0 0.0
        %856 = vmatprep.subr.mxu0 0.0
        %857 = vmatpush1.msra.mxu0 0.0
        %858 = vmatprep.subr.mxu0 0.0
        %859 = vmatpush1.msra.mxu0 0.0
        %860 = vmatprep.subr.mxu0 0.0
        %861 = vmatpush1.msra.mxu0 0.0
        %862 = vmatprep.subr.mxu0 0.0
        %863 = vmatpush1.msra.mxu0 0.0
        %864 = vmatprep.subr.mxu0 0.0
        %865 = vmatpush1.msra.mxu0 0.0
        %866 = vmatprep.subr.mxu0 0.0
        %867 = vmatpush1.msra.mxu0 0.0
        %868 = vmatprep.subr.mxu0 0.0
        %869 = vmatpush1.msra.mxu0 0.0
        %870 = vmatprep.subr.mxu0 0.0
        %871 = vmatpush1.msra.mxu0 0.0
        %872 = vmatprep.subr.mxu0 0.0
        %873 = vmatpush1.msra.mxu0 0.0
        %874 = vmatprep.subr.mxu0 0.0
        %875 = vmatpush1.msra.mxu0 0.0
        %876 = vmatprep.subr.mxu0 0.0
        %877 = vmatpush1.msra.mxu0 0.0
        %878 = vmatprep.subr.mxu0 0.0
        %879 = vmatpush1.msra.mxu0 0.0
        %880 = vmatprep.subr.mxu0 0.0
        %881 = vmatpush1.msra.mxu0 0.0
        %882 = vmatprep.subr.mxu0 0.0
        %883 = vmatpush1.msra.mxu0 0.0
        %884 = vmatprep.subr.mxu0 0.0
        %885 = vmatpush1.msra.mxu0 0.0
        %886 = vmatprep.subr.mxu0 0.0
        %887 = vmatpush1.msra.mxu0 0.0
        %888 = vmatprep.subr.mxu0 0.0
        %889 = vmatpush1.msra.mxu0 0.0
        %890 = vmatprep.subr.mxu0 0.0
        %891 = vmatpush1.msra.mxu0 0.0
        %892 = vmatprep.subr.mxu0 0.0
        %893 = vmatpush1.msra.mxu0 0.0
        %894 = vmatprep.subr.mxu0 0.0
        %895 = vmatpush1.msra.mxu0 0.0
        %896 = vmatprep.subr.mxu0 0.0
        %897 = vmatpush1.msra.mxu0 0.0
        %898 = vmatprep.subr.mxu0 0.0
        %899 = vmatpush1.msra.mxu0 0.0
        %900 = vmatprep.subr.mxu0 0.0
        %901 = vmatpush1.msra.mxu0 0.0
        %902 = vmatprep.subr.mxu0 0.0
        %903 = vmatpush1.msra.mxu0 0.0
        %904 = vmatprep.subr.mxu0 0.0
        %905 = vmatpush1.msra.mxu0 0.0
        %906 = vmatprep.subr.mxu0 0.0
        %907 = vmatpush1.msra.mxu0 0.0
        %908 = vmatprep.subr.mxu0 0.0
        %909 = vmatpush1.msra.mxu0 0.0
        %910 = vmatprep.subr.mxu0 0.0
        %911 = vmatpush1.msra.mxu0 0.0
        %912 = vmatprep.mubr.f32.mxu0 0.0
        %913 = vmatmul.mubr.f32.gmra.mrb[0].mxu0 %v846
        %v914 = vpop.f32.mrb[0].mxu0
        %v915 = vadd.f32 0.0, %v914
        %v916 = vpop.f32.mrb[0].mxu0
        %917 = vdwg.mxu0
        %918 = vst.msk [vmem:[#allocation2] sm:$0xff] %vm755, %v915
        %v919 = vld [vmem:[#allocation2] sm:$0xff]
        %v920 = vld [vmem:[#allocation3] sm:$0xff]
        %v921 = vld [vmem:[#allocation4] sm:$0xff]
        %923 = vrot.lane.b32.xlu0 %v919, 112
        %v924 = vpop.permute.xlu0 %923
        %926 = vrot.lane.b32.xlu0 %v920, 112
        %v927 = vpop.permute.xlu0 %926
        %v928 = vsel %vm755, %v924, 0
        %v930 = vsel %vm755, %v927, 0
        %932 = vmatprep.subr.mxu0 0.0
        %933 = vmatpush1.xpose.msra.mxu0 %v930
        %934 = vmatprep.subr.mxu0 0.0
        %935 = vmatpush1.xpose.msra.mxu0 0.0
        %936 = vmatprep.subr.mxu0 0.0
        %937 = vmatpush1.xpose.msra.mxu0 0.0
        %938 = vmatprep.subr.mxu0 0.0
        %939 = vmatpush1.xpose.msra.mxu0 0.0
        %940 = vmatprep.subr.mxu0 0.0
        %941 = vmatpush1.xpose.msra.mxu0 0.0
        %942 = vmatprep.subr.mxu0 0.0
        %943 = vmatpush1.xpose.msra.mxu0 0.0
        %944 = vmatprep.subr.mxu0 0.0
        %945 = vmatpush1.xpose.msra.mxu0 0.0
        %946 = vmatprep.subr.mxu0 0.0
        %947 = vmatpush1.xpose.msra.mxu0 0.0
        %948 = vmatprep.subr.mxu0 0.0
        %949 = vmatpush1.xpose.msra.mxu0 0.0
        %950 = vmatprep.subr.mxu0 0.0
        %951 = vmatpush1.xpose.msra.mxu0 0.0
        %952 = vmatprep.subr.mxu0 0.0
        %953 = vmatpush1.xpose.msra.mxu0 0.0
        %954 = vmatprep.subr.mxu0 0.0
        %955 = vmatpush1.xpose.msra.mxu0 0.0
        %956 = vmatprep.subr.mxu0 0.0
        %957 = vmatpush1.xpose.msra.mxu0 0.0
        %958 = vmatprep.subr.mxu0 0.0
        %959 = vmatpush1.xpose.msra.mxu0 0.0
        %960 = vmatprep.subr.mxu0 0.0
        %961 = vmatpush1.xpose.msra.mxu0 0.0
        %962 = vmatprep.subr.mxu0 0.0
        %963 = vmatpush1.xpose.msra.mxu0 0.0
        %964 = vmatprep.subr.mxu0 0.0
        %965 = vmatpush1.xpose.msra.mxu0 0.0
        %966 = vmatprep.subr.mxu0 0.0
        %967 = vmatpush1.xpose.msra.mxu0 0.0
        %968 = vmatprep.subr.mxu0 0.0
        %969 = vmatpush1.xpose.msra.mxu0 0.0
        %970 = vmatprep.subr.mxu0 0.0
        %971 = vmatpush1.xpose.msra.mxu0 0.0
        %972 = vmatprep.subr.mxu0 0.0
        %973 = vmatpush1.xpose.msra.mxu0 0.0
        %974 = vmatprep.subr.mxu0 0.0
        %975 = vmatpush1.xpose.msra.mxu0 0.0
        %976 = vmatprep.subr.mxu0 0.0
        %977 = vmatpush1.xpose.msra.mxu0 0.0
        %978 = vmatprep.subr.mxu0 0.0
        %979 = vmatpush1.xpose.msra.mxu0 0.0
        %980 = vmatprep.subr.mxu0 0.0
        %981 = vmatpush1.xpose.msra.mxu0 0.0
        %982 = vmatprep.subr.mxu0 0.0
        %983 = vmatpush1.xpose.msra.mxu0 0.0
        %984 = vmatprep.subr.mxu0 0.0
        %985 = vmatpush1.xpose.msra.mxu0 0.0
        %986 = vmatprep.subr.mxu0 0.0
        %987 = vmatpush1.xpose.msra.mxu0 0.0
        %988 = vmatprep.subr.mxu0 0.0
        %989 = vmatpush1.xpose.msra.mxu0 0.0
        %990 = vmatprep.subr.mxu0 0.0
        %991 = vmatpush1.xpose.msra.mxu0 0.0
        %992 = vmatprep.subr.mxu0 0.0
        %993 = vmatpush1.xpose.msra.mxu0 0.0
        %994 = vmatprep.subr.mxu0 0.0
        %995 = vmatpush1.xpose.msra.mxu0 0.0
        %996 = vmatprep.mubr.f32.mxu0 0.0
        %997 = vmatmul.mubr.f32.gmra.mrb[0].mxu0 %v928
        %v998 = vpop.f32.mrb[0].mxu0
        %v999 = vadd.f32 0.0, %v998
        %v1000 = vpop.f32.mrb[0].mxu0
        %1001 = vdwg.mxu0
        %v1002 = vsel %vm751, -1e+12, %v999
        %v1003 = vsel %vm833, %v1002, -inf
        %1004 = vmax.xlane.f32.xlu0 %v1003
        %v1005 = vpop.xlane.xlu0 %1004
        %v1006 = vsub.f32 %v1002, %v1005
        %v1007 = vmul.f32 %v1006, 1.442695
        %v1008 = vpow.pop %v1007
        %v1009 = vsel %vm833, %v1008, 0.0
        %1010 = vadd.xlane.f32.xlu0 %v1009
        %v1011 = vpop.xlane.xlu0 %1010
        %v1012 = vrcp.pop %v1011
        %v1013 = vmul.f32 %v1008, %v1012
        %1015 = vrot.lane.b32.xlu0 %v921, 112
        %v1016 = vpop.permute.xlu0 %1015
        %v1019 = vsel %vm833, %v1013, 0
        %1021 = vmatprep.subr.mxu0 0.0
        %1022 = vmatpush1.msra.mxu0 %v1016
        %1023 = vmatprep.subr.mxu0 0.0
        %1024 = vmatpush1.msra.mxu0 0.0
        %1025 = vmatprep.subr.mxu0 0.0
        %1026 = vmatpush1.msra.mxu0 0.0
        %1027 = vmatprep.subr.mxu0 0.0
        %1028 = vmatpush1.msra.mxu0 0.0
        %1029 = vmatprep.subr.mxu0 0.0
        %1030 = vmatpush1.msra.mxu0 0.0
        %1031 = vmatprep.subr.mxu0 0.0
        %1032 = vmatpush1.msra.mxu0 0.0
        %1033 = vmatprep.subr.mxu0 0.0
        %1034 = vmatpush1.msra.mxu0 0.0
        %1035 = vmatprep.subr.mxu0 0.0
        %1036 = vmatpush1.msra.mxu0 0.0
        %1037 = vmatprep.subr.mxu0 0.0
        %1038 = vmatpush1.msra.mxu0 0.0
        %1039 = vmatprep.subr.mxu0 0.0
        %1040 = vmatpush1.msra.mxu0 0.0
        %1041 = vmatprep.subr.mxu0 0.0
        %1042 = vmatpush1.msra.mxu0 0.0
        %1043 = vmatprep.subr.mxu0 0.0
        %1044 = vmatpush1.msra.mxu0 0.0
        %1045 = vmatprep.subr.mxu0 0.0
        %1046 = vmatpush1.msra.mxu0 0.0
        %1047 = vmatprep.subr.mxu0 0.0
        %1048 = vmatpush1.msra.mxu0 0.0
        %1049 = vmatprep.subr.mxu0 0.0
        %1050 = vmatpush1.msra.mxu0 0.0
        %1051 = vmatprep.subr.mxu0 0.0
        %1052 = vmatpush1.msra.mxu0 0.0
        %1053 = vmatprep.subr.mxu0 0.0
        %1054 = vmatpush1.msra.mxu0 0.0
        %1055 = vmatprep.subr.mxu0 0.0
        %1056 = vmatpush1.msra.mxu0 0.0
        %1057 = vmatprep.subr.mxu0 0.0
        %1058 = vmatpush1.msra.mxu0 0.0
        %1059 = vmatprep.subr.mxu0 0.0
        %1060 = vmatpush1.msra.mxu0 0.0
        %1061 = vmatprep.subr.mxu0 0.0
        %1062 = vmatpush1.msra.mxu0 0.0
        %1063 = vmatprep.subr.mxu0 0.0
        %1064 = vmatpush1.msra.mxu0 0.0
        %1065 = vmatprep.subr.mxu0 0.0
        %1066 = vmatpush1.msra.mxu0 0.0
        %1067 = vmatprep.subr.mxu0 0.0
        %1068 = vmatpush1.msra.mxu0 0.0
        %1069 = vmatprep.subr.mxu0 0.0
        %1070 = vmatpush1.msra.mxu0 0.0
        %1071 = vmatprep.subr.mxu0 0.0
        %1072 = vmatpush1.msra.mxu0 0.0
        %1073 = vmatprep.subr.mxu0 0.0
        %1074 = vmatpush1.msra.mxu0 0.0
        %1075 = vmatprep.subr.mxu0 0.0
        %1076 = vmatpush1.msra.mxu0 0.0
        %1077 = vmatprep.subr.mxu0 0.0
        %1078 = vmatpush1.msra.mxu0 0.0
        %1079 = vmatprep.subr.mxu0 0.0
        %1080 = vmatpush1.msra.mxu0 0.0
        %1081 = vmatprep.subr.mxu0 0.0
        %1082 = vmatpush1.msra.mxu0 0.0
        %1083 = vmatprep.subr.mxu0 0.0
        %1084 = vmatpush1.msra.mxu0 0.0
        %1085 = vmatprep.mubr.f32.mxu0 0.0
        %1086 = vmatmul.mubr.f32.gmra.mrb[0].mxu0 %v1019
        %v1087 = vpop.f32.mrb[0].mxu0
        %v1088 = vadd.f32 0.0, %v1087
        %v1089 = vpop.f32.mrb[0].mxu0
        %1090 = vdwg.mxu0
        %1092 = vrot.lane.b32.xlu0 %v1088, 16
        %v1093 = vpop.permute.xlu0 %1092
        %vm1095 = vcmask 261248
        %1096 = vst.msk [vmem:[#allocation2] sm:$0xff] %vm1095, %v1093
        %v1097 = vld [vmem:[#allocation2] sm:$0xff]
        %v1098 = vld [vmem:[#allocation3] sm:$0xff]
        %v1099 = vld [vmem:[#allocation4] sm:$0xff]
        %1101 = vrot.lane.b32.xlu0 %v1097, 96
        %v1102 = vpop.permute.xlu0 %1101
        %1104 = vrot.lane.b32.xlu0 %v1098, 96
        %v1105 = vpop.permute.xlu0 %1104
        %v1106 = vsel %vm755, %v1102, 0
        %v1108 = vsel %vm755, %v1105, 0
        %1110 = vmatprep.subr.mxu0 0.0
        %1111 = vmatpush1.xpose.msra.mxu0 %v1108
        %1112 = vmatprep.subr.mxu0 0.0
        %1113 = vmatpush1.xpose.msra.mxu0 0.0
        %1114 = vmatprep.subr.mxu0 0.0
        %1115 = vmatpush1.xpose.msra.mxu0 0.0
        %1116 = vmatprep.subr.mxu0 0.0
        %1117 = vmatpush1.xpose.msra.mxu0 0.0
        %1118 = vmatprep.subr.mxu0 0.0
        %1119 = vmatpush1.xpose.msra.mxu0 0.0
        %1120 = vmatprep.subr.mxu0 0.0
        %1121 = vmatpush1.xpose.msra.mxu0 0.0
        %1122 = vmatprep.subr.mxu0 0.0
        %1123 = vmatpush1.xpose.msra.mxu0 0.0
        %1124 = vmatprep.subr.mxu0 0.0
        %1125 = vmatpush1.xpose.msra.mxu0 0.0
        %1126 = vmatprep.subr.mxu0 0.0
        %1127 = vmatpush1.xpose.msra.mxu0 0.0
        %1128 = vmatprep.subr.mxu0 0.0
        %1129 = vmatpush1.xpose.msra.mxu0 0.0
        %1130 = vmatprep.subr.mxu0 0.0
        %1131 = vmatpush1.xpose.msra.mxu0 0.0
        %1132 = vmatprep.subr.mxu0 0.0
        %1133 = vmatpush1.xpose.msra.mxu0 0.0
        %1134 = vmatprep.subr.mxu0 0.0
        %1135 = vmatpush1.xpose.msra.mxu0 0.0
        %1136 = vmatprep.subr.mxu0 0.0
        %1137 = vmatpush1.xpose.msra.mxu0 0.0
        %1138 = vmatprep.subr.mxu0 0.0
        %1139 = vmatpush1.xpose.msra.mxu0 0.0
        %1140 = vmatprep.subr.mxu0 0.0
        %1141 = vmatpush1.xpose.msra.mxu0 0.0
        %1142 = vmatprep.subr.mxu0 0.0
        %1143 = vmatpush1.xpose.msra.mxu0 0.0
        %1144 = vmatprep.subr.mxu0 0.0
        %1145 = vmatpush1.xpose.msra.mxu0 0.0
        %1146 = vmatprep.subr.mxu0 0.0
        %1147 = vmatpush1.xpose.msra.mxu0 0.0
        %1148 = vmatprep.subr.mxu0 0.0
        %1149 = vmatpush1.xpose.msra.mxu0 0.0
        %1150 = vmatprep.subr.mxu0 0.0
        %1151 = vmatpush1.xpose.msra.mxu0 0.0
        %1152 = vmatprep.subr.mxu0 0.0
        %1153 = vmatpush1.xpose.msra.mxu0 0.0
        %1154 = vmatprep.subr.mxu0 0.0
        %1155 = vmatpush1.xpose.msra.mxu0 0.0
        %1156 = vmatprep.subr.mxu0 0.0
        %1157 = vmatpush1.xpose.msra.mxu0 0.0
        %1158 = vmatprep.subr.mxu0 0.0
        %1159 = vmatpush1.xpose.msra.mxu0 0.0
        %1160 = vmatprep.subr.mxu0 0.0
        %1161 = vmatpush1.xpose.msra.mxu0 0.0
        %1162 = vmatprep.subr.mxu0 0.0
        %1163 = vmatpush1.xpose.msra.mxu0 0.0
        %1164 = vmatprep.subr.mxu0 0.0
        %1165 = vmatpush1.xpose.msra.mxu0 0.0
        %1166 = vmatprep.subr.mxu0 0.0
        %1167 = vmatpush1.xpose.msra.mxu0 0.0
        %1168 = vmatprep.subr.mxu0 0.0
        %1169 = vmatpush1.xpose.msra.mxu0 0.0
        %1170 = vmatprep.subr.mxu0 0.0
        %1171 = vmatpush1.xpose.msra.mxu0 0.0
        %1172 = vmatprep.subr.mxu0 0.0
        %1173 = vmatpush1.xpose.msra.mxu0 0.0
        %1174 = vmatprep.mubr.f32.mxu0 0.0
        %1175 = vmatmul.mubr.f32.gmra.mrb[0].mxu0 %v1106
        %v1176 = vpop.f32.mrb[0].mxu0
        %v1177 = vadd.f32 0.0, %v1176
        %v1178 = vpop.f32.mrb[0].mxu0
        %1179 = vdwg.mxu0
        %v1180 = vsel %vm751, -1e+12, %v1177
        %v1181 = vsel %vm833, %v1180, -inf
        %1182 = vmax.xlane.f32.xlu0 %v1181
        %v1183 = vpop.xlane.xlu0 %1182
        %v1184 = vsub.f32 %v1180, %v1183
        %v1185 = vmul.f32 %v1184, 1.442695
        %v1186 = vpow.pop %v1185
        %v1187 = vsel %vm833, %v1186, 0.0
        %1188 = vadd.xlane.f32.xlu0 %v1187
        %v1189 = vpop.xlane.xlu0 %1188
        %v1190 = vrcp.pop %v1189
        %v1191 = vmul.f32 %v1186, %v1190
        %1193 = vrot.lane.b32.xlu0 %v1099, 96
        %v1194 = vpop.permute.xlu0 %1193
        %v1197 = vsel %vm833, %v1191, 0
        %1199 = vmatprep.subr.mxu0 0.0
        %1200 = vmatpush1.msra.mxu0 %v1194
        %1201 = vmatprep.subr.mxu0 0.0
        %1202 = vmatpush1.msra.mxu0 0.0
        %1203 = vmatprep.subr.mxu0 0.0
        %1204 = vmatpush1.msra.mxu0 0.0
        %1205 = vmatprep.subr.mxu0 0.0
        %1206 = vmatpush1.msra.mxu0 0.0
        %1207 = vmatprep.subr.mxu0 0.0
        %1208 = vmatpush1.msra.mxu0 0.0
        %1209 = vmatprep.subr.mxu0 0.0
        %1210 = vmatpush1.msra.mxu0 0.0
        %1211 = vmatprep.subr.mxu0 0.0
        %1212 = vmatpush1.msra.mxu0 0.0
        %1213 = vmatprep.subr.mxu0 0.0
        %1214 = vmatpush1.msra.mxu0 0.0
        %1215 = vmatprep.subr.mxu0 0.0
        %1216 = vmatpush1.msra.mxu0 0.0
        %1217 = vmatprep.subr.mxu0 0.0
        %1218 = vmatpush1.msra.mxu0 0.0
        %1219 = vmatprep.subr.mxu0 0.0
        %1220 = vmatpush1.msra.mxu0 0.0
        %1221 = vmatprep.subr.mxu0 0.0
        %1222 = vmatpush1.msra.mxu0 0.0
        %1223 = vmatprep.subr.mxu0 0.0
        %1224 = vmatpush1.msra.mxu0 0.0
        %1225 = vmatprep.subr.mxu0 0.0
        %1226 = vmatpush1.msra.mxu0 0.0
        %1227 = vmatprep.subr.mxu0 0.0
        %1228 = vmatpush1.msra.mxu0 0.0
        %1229 = vmatprep.subr.mxu0 0.0
        %1230 = vmatpush1.msra.mxu0 0.0
        %1231 = vmatprep.subr.mxu0 0.0
        %1232 = vmatpush1.msra.mxu0 0.0
        %1233 = vmatprep.subr.mxu0 0.0
        %1234 = vmatpush1.msra.mxu0 0.0
        %1235 = vmatprep.subr.mxu0 0.0
        %1236 = vmatpush1.msra.mxu0 0.0
        %1237 = vmatprep.subr.mxu0 0.0
        %1238 = vmatpush1.msra.mxu0 0.0
        %1239 = vmatprep.subr.mxu0 0.0
        %1240 = vmatpush1.msra.mxu0 0.0
        %1241 = vmatprep.subr.mxu0 0.0
        %1242 = vmatpush1.msra.mxu0 0.0
        %1243 = vmatprep.subr.mxu0 0.0
        %1244 = vmatpush1.msra.mxu0 0.0
        %1245 = vmatprep.subr.mxu0 0.0
        %1246 = vmatpush1.msra.mxu0 0.0
        %1247 = vmatprep.subr.mxu0 0.0
        %1248 = vmatpush1.msra.mxu0 0.0
        %1249 = vmatprep.subr.mxu0 0.0
        %1250 = vmatpush1.msra.mxu0 0.0
        %1251 = vmatprep.subr.mxu0 0.0
        %1252 = vmatpush1.msra.mxu0 0.0
        %1253 = vmatprep.subr.mxu0 0.0
        %1254 = vmatpush1.msra.mxu0 0.0
        %1255 = vmatprep.subr.mxu0 0.0
        %1256 = vmatpush1.msra.mxu0 0.0
        %1257 = vmatprep.subr.mxu0 0.0
        %1258 = vmatpush1.msra.mxu0 0.0
        %1259 = vmatprep.subr.mxu0 0.0
        %1260 = vmatpush1.msra.mxu0 0.0
        %1261 = vmatprep.subr.mxu0 0.0
        %1262 = vmatpush1.msra.mxu0 0.0
        %1263 = vmatprep.mubr.f32.mxu0 0.0
        %1264 = vmatmul.mubr.f32.gmra.mrb[0].mxu0 %v1197
        %v1265 = vpop.f32.mrb[0].mxu0
        %v1266 = vadd.f32 0.0, %v1265
        %v1267 = vpop.f32.mrb[0].mxu0
        %1268 = vdwg.mxu0
        %1270 = vrot.lane.b32.xlu0 %v1266, 32
        %v1271 = vpop.permute.xlu0 %1270
        %vm1273 = vcmask 392448
        %1274 = vst.msk [vmem:[#allocation2] sm:$0xff] %vm1273, %v1271
        %v1275 = vld [vmem:[#allocation2] sm:$0xff]
        %v1276 = vld [vmem:[#allocation3] sm:$0xff]
        %v1277 = vld [vmem:[#allocation4] sm:$0xff]
        %1279 = vrot.lane.b32.xlu0 %v1275, 80
        %v1280 = vpop.permute.xlu0 %1279
        %1282 = vrot.lane.b32.xlu0 %v1276, 80
        %v1283 = vpop.permute.xlu0 %1282
        %v1284 = vsel %vm755, %v1280, 0
        %v1286 = vsel %vm755, %v1283, 0
        %1288 = vmatprep.subr.mxu0 0.0
        %1289 = vmatpush1.xpose.msra.mxu0 %v1286
        %1290 = vmatprep.subr.mxu0 0.0
        %1291 = vmatpush1.xpose.msra.mxu0 0.0
        %1292 = vmatprep.subr.mxu0 0.0
        %1293 = vmatpush1.xpose.msra.mxu0 0.0
        %1294 = vmatprep.subr.mxu0 0.0
        %1295 = vmatpush1.xpose.msra.mxu0 0.0
        %1296 = vmatprep.subr.mxu0 0.0
        %1297 = vmatpush1.xpose.msra.mxu0 0.0
        %1298 = vmatprep.subr.mxu0 0.0
        %1299 = vmatpush1.xpose.msra.mxu0 0.0
        %1300 = vmatprep.subr.mxu0 0.0
        %1301 = vmatpush1.xpose.msra.mxu0 0.0
        %1302 = vmatprep.subr.mxu0 0.0
        %1303 = vmatpush1.xpose.msra.mxu0 0.0
        %1304 = vmatprep.subr.mxu0 0.0
        %1305 = vmatpush1.xpose.msra.mxu0 0.0
        %1306 = vmatprep.subr.mxu0 0.0
        %1307 = vmatpush1.xpose.msra.mxu0 0.0
        %1308 = vmatprep.subr.mxu0 0.0
        %1309 = vmatpush1.xpose.msra.mxu0 0.0
        %1310 = vmatprep.subr.mxu0 0.0
        %1311 = vmatpush1.xpose.msra.mxu0 0.0
        %1312 = vmatprep.subr.mxu0 0.0
        %1313 = vmatpush1.xpose.msra.mxu0 0.0
        %1314 = vmatprep.subr.mxu0 0.0
        %1315 = vmatpush1.xpose.msra.mxu0 0.0
        %1316 = vmatprep.subr.mxu0 0.0
        %1317 = vmatpush1.xpose.msra.mxu0 0.0
        %1318 = vmatprep.subr.mxu0 0.0
        %1319 = vmatpush1.xpose.msra.mxu0 0.0
        %1320 = vmatprep.subr.mxu0 0.0
        %1321 = vmatpush1.xpose.msra.mxu0 0.0
        %1322 = vmatprep.subr.mxu0 0.0
        %1323 = vmatpush1.xpose.msra.mxu0 0.0
        %1324 = vmatprep.subr.mxu0 0.0
        %1325 = vmatpush1.xpose.msra.mxu0 0.0
        %1326 = vmatprep.subr.mxu0 0.0
        %1327 = vmatpush1.xpose.msra.mxu0 0.0
        %1328 = vmatprep.subr.mxu0 0.0
        %1329 = vmatpush1.xpose.msra.mxu0 0.0
        %1330 = vmatprep.subr.mxu0 0.0
        %1331 = vmatpush1.xpose.msra.mxu0 0.0
        %1332 = vmatprep.subr.mxu0 0.0
        %1333 = vmatpush1.xpose.msra.mxu0 0.0
        %1334 = vmatprep.subr.mxu0 0.0
        %1335 = vmatpush1.xpose.msra.mxu0 0.0
        %1336 = vmatprep.subr.mxu0 0.0
        %1337 = vmatpush1.xpose.msra.mxu0 0.0
        %1338 = vmatprep.subr.mxu0 0.0
        %1339 = vmatpush1.xpose.msra.mxu0 0.0
        %1340 = vmatprep.subr.mxu0 0.0
        %1341 = vmatpush1.xpose.msra.mxu0 0.0
        %1342 = vmatprep.subr.mxu0 0.0
        %1343 = vmatpush1.xpose.msra.mxu0 0.0
        %1344 = vmatprep.subr.mxu0 0.0
        %1345 = vmatpush1.xpose.msra.mxu0 0.0
        %1346 = vmatprep.subr.mxu0 0.0
        %1347 = vmatpush1.xpose.msra.mxu0 0.0
        %1348 = vmatprep.subr.mxu0 0.0
        %1349 = vmatpush1.xpose.msra.mxu0 0.0
        %1350 = vmatprep.subr.mxu0 0.0
        %1351 = vmatpush1.xpose.msra.mxu0 0.0
        %1352 = vmatprep.mubr.f32.mxu0 0.0
        %1353 = vmatmul.mubr.f32.gmra.mrb[0].mxu0 %v1284
        %v1354 = vpop.f32.mrb[0].mxu0
        %v1355 = vadd.f32 0.0, %v1354
        %v1356 = vpop.f32.mrb[0].mxu0
        %1357 = vdwg.mxu0
        %v1358 = vsel %vm751, -1e+12, %v1355
        %v1359 = vsel %vm833, %v1358, -inf
        %1360 = vmax.xlane.f32.xlu0 %v1359
        %v1361 = vpop.xlane.xlu0 %1360
        %v1362 = vsub.f32 %v1358, %v1361
        %v1363 = vmul.f32 %v1362, 1.442695
        %v1364 = vpow.pop %v1363
        %v1365 = vsel %vm833, %v1364, 0.0
        %1366 = vadd.xlane.f32.xlu0 %v1365
        %v1367 = vpop.xlane.xlu0 %1366
        %v1368 = vrcp.pop %v1367
        %v1369 = vmul.f32 %v1364, %v1368
        %1371 = vrot.lane.b32.xlu0 %v1277, 80
        %v1372 = vpop.permute.xlu0 %1371
        %v1375 = vsel %vm833, %v1369, 0
        %1377 = vmatprep.subr.mxu0 0.0
        %1378 = vmatpush1.msra.mxu0 %v1372
        %1379 = vmatprep.subr.mxu0 0.0
        %1380 = vmatpush1.msra.mxu0 0.0
        %1381 = vmatprep.subr.mxu0 0.0
        %1382 = vmatpush1.msra.mxu0 0.0
        %1383 = vmatprep.subr.mxu0 0.0
        %1384 = vmatpush1.msra.mxu0 0.0
        %1385 = vmatprep.subr.mxu0 0.0
        %1386 = vmatpush1.msra.mxu0 0.0
        %1387 = vmatprep.subr.mxu0 0.0
        %1388 = vmatpush1.msra.mxu0 0.0
        %1389 = vmatprep.subr.mxu0 0.0
        %1390 = vmatpush1.msra.mxu0 0.0
        %1391 = vmatprep.subr.mxu0 0.0
        %1392 = vmatpush1.msra.mxu0 0.0
        %1393 = vmatprep.subr.mxu0 0.0
        %1394 = vmatpush1.msra.mxu0 0.0
        %1395 = vmatprep.subr.mxu0 0.0
        %1396 = vmatpush1.msra.mxu0 0.0
        %1397 = vmatprep.subr.mxu0 0.0
        %1398 = vmatpush1.msra.mxu0 0.0
        %1399 = vmatprep.subr.mxu0 0.0
        %1400 = vmatpush1.msra.mxu0 0.0
        %1401 = vmatprep.subr.mxu0 0.0
        %1402 = vmatpush1.msra.mxu0 0.0
        %1403 = vmatprep.subr.mxu0 0.0
        %1404 = vmatpush1.msra.mxu0 0.0
        %1405 = vmatprep.subr.mxu0 0.0
        %1406 = vmatpush1.msra.mxu0 0.0
        %1407 = vmatprep.subr.mxu0 0.0
        %1408 = vmatpush1.msra.mxu0 0.0
        %1409 = vmatprep.subr.mxu0 0.0
        %1410 = vmatpush1.msra.mxu0 0.0
        %1411 = vmatprep.subr.mxu0 0.0
        %1412 = vmatpush1.msra.mxu0 0.0
        %1413 = vmatprep.subr.mxu0 0.0
        %1414 = vmatpush1.msra.mxu0 0.0
        %1415 = vmatprep.subr.mxu0 0.0
        %1416 = vmatpush1.msra.mxu0 0.0
        %1417 = vmatprep.subr.mxu0 0.0
        %1418 = vmatpush1.msra.mxu0 0.0
        %1419 = vmatprep.subr.mxu0 0.0
        %1420 = vmatpush1.msra.mxu0 0.0
        %1421 = vmatprep.subr.mxu0 0.0
        %1422 = vmatpush1.msra.mxu0 0.0
        %1423 = vmatprep.subr.mxu0 0.0
        %1424 = vmatpush1.msra.mxu0 0.0
        %1425 = vmatprep.subr.mxu0 0.0
        %1426 = vmatpush1.msra.mxu0 0.0
        %1427 = vmatprep.subr.mxu0 0.0
        %1428 = vmatpush1.msra.mxu0 0.0
        %1429 = vmatprep.subr.mxu0 0.0
        %1430 = vmatpush1.msra.mxu0 0.0
        %1431 = vmatprep.subr.mxu0 0.0
        %1432 = vmatpush1.msra.mxu0 0.0
        %1433 = vmatprep.subr.mxu0 0.0
        %1434 = vmatpush1.msra.mxu0 0.0
        %1435 = vmatprep.subr.mxu0 0.0
        %1436 = vmatpush1.msra.mxu0 0.0
        %1437 = vmatprep.subr.mxu0 0.0
        %1438 = vmatpush1.msra.mxu0 0.0
        %1439 = vmatprep.subr.mxu0 0.0
        %1440 = vmatpush1.msra.mxu0 0.0
        %1441 = vmatprep.mubr.f32.mxu0 0.0
        %1442 = vmatmul.mubr.f32.gmra.mrb[0].mxu0 %v1375
        %v1443 = vpop.f32.mrb[0].mxu0
        %v1444 = vadd.f32 0.0, %v1443
        %v1445 = vpop.f32.mrb[0].mxu0
        %1446 = vdwg.mxu0
        %1448 = vrot.lane.b32.xlu0 %v1444, 48
        %v1449 = vpop.permute.xlu0 %1448
        %vm1451 = vcmask 523648
        %1452 = vst.msk [vmem:[#allocation2] sm:$0xff] %vm1451, %v1449
        %v1453 = vld [vmem:[#allocation2] sm:$0xff]
        %v1454 = vld [vmem:[%s9] sm:$0xff]
        %v1455 = vld [vmem:[%s9 + $0x8] sm:$0xff]
        %v1456 = vld [vmem:[%s9 + $0x10] sm:$0xff]
        %v1457 = vld [vmem:[%s9 + $0x18] sm:$0xff]
        %v1458 = vld [vmem:[%s9 + $0x20] sm:$0xff]
        %v1459 = vld [vmem:[%s9 + $0x28] sm:$0xff]
        %v1460 = vld [vmem:[%s9 + $0x30] sm:$0xff]
        %v1461 = vld [vmem:[%s9 + $0x38] sm:$0xff]
        %v1462 = vld [vmem:[%s10] sm:$0x1]
        %v1464 = vlaneseq
        %v1465 = vshrl.u32 %v1464, 7
        %v1466 = vsub.s32 0, %v1465
        %v1467 = vrot.slane %v1462, %v1466
        %v1470 = vsel %vm573, %v1453, 0
        %1472 = vmatprep.subr.mxu0 0.0
        %1473 = vmatpush1.msra.mxu0 %v1454
        %1474 = vmatprep.subr.mxu0 0.0
        %1475 = vmatpush1.msra.mxu0 %v1455
        %1476 = vmatprep.subr.mxu0 0.0
        %1477 = vmatpush1.msra.mxu0 %v1456
        %1478 = vmatprep.subr.mxu0 0.0
        %1479 = vmatpush1.msra.mxu0 %v1457
        %1480 = vmatprep.subr.mxu0 0.0
        %1481 = vmatpush1.msra.mxu0 %v1458
        %1482 = vmatprep.subr.mxu0 0.0
        %1483 = vmatpush1.msra.mxu0 %v1459
        %1484 = vmatprep.subr.mxu0 0.0
        %1485 = vmatpush1.msra.mxu0 %v1460
        %1486 = vmatprep.subr.mxu0 0.0
        %1487 = vmatpush1.msra.mxu0 %v1461
        %1488 = vmatprep.subr.mxu0 0.0
        %1489 = vmatpush1.msra.mxu0 0.0
        %1490 = vmatprep.subr.mxu0 0.0
        %1491 = vmatpush1.msra.mxu0 0.0
        %1492 = vmatprep.subr.mxu0 0.0
        %1493 = vmatpush1.msra.mxu0 0.0
        %1494 = vmatprep.subr.mxu0 0.0
        %1495 = vmatpush1.msra.mxu0 0.0
        %1496 = vmatprep.subr.mxu0 0.0
        %1497 = vmatpush1.msra.mxu0 0.0
        %1498 = vmatprep.subr.mxu0 0.0
        %1499 = vmatpush1.msra.mxu0 0.0
        %1500 = vmatprep.subr.mxu0 0.0
        %1501 = vmatpush1.msra.mxu0 0.0
        %1502 = vmatprep.subr.mxu0 0.0
        %1503 = vmatpush1.msra.mxu0 0.0
        %1504 = vmatprep.subr.mxu0 0.0
        %1505 = vmatpush1.msra.mxu0 0.0
        %1506 = vmatprep.subr.mxu0 0.0
        %1507 = vmatpush1.msra.mxu0 0.0
        %1508 = vmatprep.subr.mxu0 0.0
        %1509 = vmatpush1.msra.mxu0 0.0
        %1510 = vmatprep.subr.mxu0 0.0
        %1511 = vmatpush1.msra.mxu0 0.0
        %1512 = vmatprep.subr.mxu0 0.0
        %1513 = vmatpush1.msra.mxu0 0.0
        %1514 = vmatprep.subr.mxu0 0.0
        %1515 = vmatpush1.msra.mxu0 0.0
        %1516 = vmatprep.subr.mxu0 0.0
        %1517 = vmatpush1.msra.mxu0 0.0
        %1518 = vmatprep.subr.mxu0 0.0
        %1519 = vmatpush1.msra.mxu0 0.0
        %1520 = vmatprep.subr.mxu0 0.0
        %1521 = vmatpush1.msra.mxu0 0.0
        %1522 = vmatprep.subr.mxu0 0.0
        %1523 = vmatpush1.msra.mxu0 0.0
        %1524 = vmatprep.subr.mxu0 0.0
        %1525 = vmatpush1.msra.mxu0 0.0
        %1526 = vmatprep.subr.mxu0 0.0
        %1527 = vmatpush1.msra.mxu0 0.0
        %1528 = vmatprep.subr.mxu0 0.0
        %1529 = vmatpush1.msra.mxu0 0.0
        %1530 = vmatprep.subr.mxu0 0.0
        %1531 = vmatpush1.msra.mxu0 0.0
        %1532 = vmatprep.subr.mxu0 0.0
        %1533 = vmatpush1.msra.mxu0 0.0
        %1534 = vmatprep.subr.mxu0 0.0
        %1535 = vmatpush1.msra.mxu0 0.0
        %1536 = vmatprep.mubr.f32.mxu0 0.0
        %1537 = vmatmul.mubr.f32.gmra.mrb[0].mxu0 %v1470
        %v1538 = vpop.f32.mrb[0].mxu0
        %v1539 = vadd.f32 %v1467, %v1538
        %v1540 = vpop.f32.mrb[0].mxu0
        %1541 = vdwg.mxu0
        %1542 = vst.msk [vmem:[%s485] sm:$0xff] %vm498, %v1539
        %s1543 = sand.u32 %s286, 1
        %s1544 = scalar_lea.sflag [#allocation7], %s1543
        %s1545 = sand.u32 %s286, 1
        %s1546 = smul.addr %s1545, 8
        %s1547 = scalar_lea.vmem [#allocation13], %s1546
        // Predicated region
        $region81: #{tpu_custom_call.1} parent=63 // pred_check
          %p1548 = pneg %p296
        $region82: #{tpu_custom_call.1} parent=63 // pred_check_branch
          %1550 = sbr.rel (%p1548) target = $region84
        $region83: #{tpu_custom_call.1} parent=63 // pred_region
          %s1552 = ssub.s32 128, 128
          %1553 = vsyncadd %s1544, %s1552
          %s1554 = smul.addr %s32, 128
          %s1555 = scalar_lea.hbm %s11, %s1554
          %s1557 = sshll.u32 %s1547, 4
          %s1558 = int_to_ptr.vmem [resolvable:$true] %s1557
          %1560 = dma.vmem_to_hbm [thread:$0]  %s1558, 128, %s1555, %s1544
        $region84: #{tpu_custom_call.1} parent=63 // pred_fallthru
          _
      $region64: #{tpu_custom_call.1} parent=5 // pred_fallthru
        _
      %p1561 = scmp.le.s32.totalorder 2, %s27
      // Predicated region
      $region85: #{tpu_custom_call.1} parent=5 // pred_check
        %p1562 = pneg %p1561
      $region86: #{tpu_custom_call.1} parent=5 // pred_check_branch
        %1564 = sbr.rel (%p1562) target = $region88
      $region87: #{tpu_custom_call.1} parent=5 // pred_region
        %s1565 = ssub.s32 %s27, 2
        // Predicated region
        $region89: #{tpu_custom_call.1} parent=87 // pred_check
          %p1566 = pneg %p302
        $region90: #{tpu_custom_call.1} parent=87 // pred_check_branch
          %1568 = sbr.rel (%p1566) target = $region92
        $region91: #{tpu_custom_call.1} parent=87 // pred_region
          %s1569 = sand.u32 %s287, 1
          %s1570 = scalar_lea.sflag [#allocation7], %s1569
          %s1571 = sand.u32 %s287, 1
          %s1572 = smul.addr %s1571, 8
          %s1573 = scalar_lea.vmem [#allocation13], %s1572
          %1574 = dma.done %s1570, 128
        $region92: #{tpu_custom_call.1} parent=87 // pred_fallthru
          _
      $region88: #{tpu_custom_call.1} parent=5 // pred_fallthru
        _
    $region6: #{tpu_custom_call.1} parent=1 // loop_footer
      %s31 = sadd.s32 1, %s27
    $region7: #{tpu_custom_call.1} parent=1 // loop_footer_branch
      %26 = sbr.rel target = $region3
    $region8: #{tpu_custom_call.1} parent=1 // loop_exit
      _
    %1575 = vsyncpa [#allocation6], 1
    %s1576 = scalar_lea.sflag [#allocation6], 1
    %1577 = vsyncpa %s1576, 1
    %1578 = vsyncpa [#allocation9], 1
    %s1579 = scalar_lea.sflag [#allocation9], 1
    %1580 = vsyncpa %s1579, 1
    %1581 = vsyncpa [#allocation12], 1
    %1582 = vsyncpa [#allocation7], 1
    %s1583 = scalar_lea.sflag [#allocation7], 1
    %1584 = vsyncpa %s1583, 1

</llo_original>
